<compile_context>
chip_gen: v6e
topology: v6e:2x2x1
jax: 0.10.0
libtpu: 0.0.40
codegen_flags: <defaults>
</compile_context>

<pallas_src>
import functools

import jax
import jax.numpy as jnp
from jax.experimental import pallas as pl
from jax.experimental.pallas import tpu as pltpu


def _build_effective_weights(w_hwio):
    """w_hwio: (3, 3, C_in, C_out) -> W_eff: (3, 3, C_in, 4*C_out)."""
    kh, kw, cin, cout = w_hwio.shape
    assert kh == 3 and kw == 3
    w_eff = jnp.zeros((3, 3, cin, 4 * cout), w_hwio.dtype)
    for a in range(2):
        for b in range(2):
            phase = 2 * a + b
            for ky in range(3):
                for kx in range(3):
                    dy = 1 + (a + ky - 1) // 2   # in {0, 1, 2}
                    dx = 1 + (b + kx - 1) // 2   # in {0, 1, 2}
                    w_eff = w_eff.at[dy, dx, :,
                                     phase * cout:(phase + 1) * cout].add(
                                         w_hwio[ky, kx])
    return w_eff


def _pick_tile_n(C):
    """Output-channel tile (lanes).  Full 4*C when small; <=512-wide slab
    (multiple of 128) when large so weights/acc stay bounded per grid step."""
    n_out = 4 * C
    if n_out <= 512:
        return n_out
    for cand in (512, 384, 256, 128):
        if n_out % cand == 0:
            return cand
    return n_out


def _pick_tile_h(H, W, tN):
    """Rows per output tile.

    Caps the f32 accumulator at ~128 KiB so it fits the 64x4 KiB vreg file
    (the 9 functional `acc += dot` updates then never round-trip VMEM), and
    keeps >= 2 row tiles per image when H allows it (pipelining + megacore
    grain), with the tile height a multiple of 8 (sublane).
    """
    if H % 8 != 0:
        return H                          # tiny / odd spatial sizes: one tile
    row_bytes = W * tN * 4                # one accumulator row (f32)
    max_rows = max(8, ((128 << 10) // max(1, row_bytes)) // 8 * 8)
    th = 8
    for cand in range(8, H // 2 + 1, 8):  # proper divisors -> >= 2 tiles
        if H % cand == 0 and cand <= max_rows:
            th = cand
    return th


def _vmem_limit_bytes():
    """3/4 of the chip's physical VMEM (v5e/v6e: 128 MiB -> 96 MiB,
    v7x: 64 MiB -> 48 MiB), with a conservative fallback."""
    try:
        cap = int(pltpu.get_tpu_info().vmem_capacity_bytes)
    except Exception:
        cap = 64 << 20
    return max(32 << 20, (cap * 3) // 4)


def _upsample_conv_kernel(x_ref, w_ref, b_ref, o_ref, *, tH, W, C, tN):
    """One (batch, N-tile, row-tile) grid step.

    x_ref: (1, H+2, W+2, C)   bf16  whole padded image; block index constant
                                    across the N-tile and row-tile axes, so it
                                    is DMA'd once per batch and stays resident.
    w_ref: (3, 3, C, tN)      bf16  phase-folded conv-weight slab; block index
                                    constant across the innermost row-tile axis.
    b_ref: (1, tN)            f32   bias slab (replicated over the 4 phases)
    o_ref: (1, tH, W, tN)     bf16  phase-packed output rows for this tile
    """
    row0 = pl.multiple_of(pl.program_id(2) * tH, tH)

    # Bias-initialized f32 accumulator (no separate bias sweep).  The 128 KiB
    # cap in _pick_tile_h keeps it in vregs -> no VMEM spill of the chain.
    acc = jnp.broadcast_to(b_ref[...], (tH * W, tN))

    # 9 shifted taps; each is a direct ref-window load feeding one MXU matmul
    # (bf16 x bf16 -> f32 accumulate).
    for dy in range(3):
        for dx in range(3):
            patch = x_ref[0, pl.ds(row0 + dy, tH), dx:dx + W, :]   # (tH, W, C)
            acc = acc + jnp.dot(patch.reshape(tH * W, C), w_ref[dy, dx],
                                preferred_element_type=jnp.float32)

    o_ref[0] = acc.reshape(tH, W, tN).astype(o_ref.dtype)


def upsample_forward(x_nchw, w_oihw, bias, *, out_dtype=jnp.bfloat16):
    """Equivalent of UpSample.forward. x_nchw: (B, C, H, W) -> (B, C, 2H, 2W).

    Matmul operands and the kernel output are bf16 (f32 accumulation); pass
    out_dtype=jnp.float32 if bit-width parity with the f32 PyTorch module is
    required (costs one extra f32 write in the epilogue).
    """
    B, C, H, W = x_nchw.shape
    # NOTE: W % 8 == 0 keeps the in-kernel (tH, W, C)->(tH*W, C) merge and the
    # output store layout-clean; other widths are correct but pay relayouts.

    # NHWC + 1-px halo pad; bf16 operands for the MXU (f32 accumulation).
    x = jnp.transpose(x_nchw, (0, 2, 3, 1)).astype(jnp.bfloat16)
    x_pad = jnp.pad(x, ((0, 0), (1, 1), (1, 1), (0, 0)))     # (B, H+2, W+2, C)

    w_hwio = jnp.transpose(w_oihw, (2, 3, 1, 0))              # (3, 3, Cin, Cout)
    w_eff = _build_effective_weights(w_hwio).astype(jnp.bfloat16)  # (3,3,C,4C)
    bias4 = jnp.tile(bias, 4).reshape(1, 4 * C).astype(jnp.float32)

    tN = _pick_tile_n(C)
    tH = _pick_tile_h(H, W, tN)
    n_nt = (4 * C) // tN
    n_ht = H // tH
    kernel = functools.partial(_upsample_conv_kernel, tH=tH, W=W, C=C, tN=tN)

    # Row-tile axis: the padded-image block is constant along it, so prefer
    # sharding batch / N-tiles across the v7x cores when they give enough grain.
    row_sem = "arbitrary" if (B * n_nt) >= 2 else "parallel"

    y = pl.pallas_call(
        kernel,
        out_shape=jax.ShapeDtypeStruct((B, H, W, 4 * C), jnp.bfloat16),
        grid_spec=pl.GridSpec(
            # Row tiles innermost: weight slab fetched once per (batch, N-tile),
            # padded image fetched once per batch.
            grid=(B, n_nt, n_ht),
            in_specs=[
                pl.BlockSpec((1, H + 2, W + 2, C), lambda b, n, i: (b, 0, 0, 0)),
                pl.BlockSpec((3, 3, C, tN), lambda b, n, i: (0, 0, 0, n)),
                pl.BlockSpec((1, tN), lambda b, n, i: (0, n)),
            ],
            # Lane-dense whenever tN >= 128 (any realistic channel count).
            out_specs=pl.BlockSpec((1, tH, W, tN), lambda b, n, i: (b, i, 0, n)),
        ),
        compiler_params=pltpu.CompilerParams(
            dimension_semantics=("parallel", "parallel", row_sem),
            vmem_limit_bytes=_vmem_limit_bytes()),
    )(x_pad, w_eff, bias4)

    # Single-pass de-interleave of the 4 phases fused with NHWC->NCHW (and the
    # optional up-cast), now reading/writing bf16:
    # (B,H,W,2,2,C) -> (B,C,H,2,W,2) -> (B,C,2H,2W).
    y = y.reshape(B, H, W, 2, 2, C)
    y = jnp.transpose(y, (0, 5, 1, 3, 2, 4)).reshape(B, C, 2 * H, 2 * W)
    return y.astype(out_dtype)


def reference_forward(x_nchw, w_oihw, bias):
    """Pure-JAX f32 reference: nearest 2x upsample + conv2d (padding=1)."""
    xu = jnp.repeat(jnp.repeat(x_nchw, 2, axis=2), 2, axis=3)
    out = jax.lax.conv_general_dilated(
        xu, w_oihw, window_strides=(1, 1), padding=((1, 1), (1, 1)),
        dimension_numbers=("NCHW", "OIHW", "NCHW"))
    return out + bias[None, :, None, None]


if __name__ == "__main__":
    B, C, H, W = 2, 4, 16, 16

    key = jax.random.PRNGKey(0)
    kx, kw, kb = jax.random.split(key, 3)

    # Deterministic parameter init mimicking nn.Conv2d defaults
    # (uniform(-1/sqrt(fan_in), 1/sqrt(fan_in)), fan_in = C*3*3).
    fan_in = C * 3 * 3
    bound = 1.0 / (fan_in ** 0.5)
    w_oihw = jax.random.uniform(kw, (C, C, 3, 3), jnp.float32, -bound, bound)
    bias = jax.random.uniform(kb, (C,), jnp.float32, -bound, bound)

    x = jax.random.normal(kx, (B, C, H, W), jnp.float32)

    upsample = jax.jit(upsample_forward)
    out = jax.block_until_ready(upsample(x, w_oihw, bias))

    ref = reference_forward(x, w_oihw, bias)
    assert out.shape == (B, C, 2 * H, 2 * W), out.shape
    # bf16 matmul operands + bf16 output (f32 accumulation) vs. an all-f32
    # reference: tolerance sized for bf16 rounding, far below any real bug.
    assert jnp.allclose(out.astype(jnp.float32), ref, rtol=5e-2, atol=5e-2), (
        float(jnp.max(jnp.abs(out.astype(jnp.float32) - ref))))

    print("KERNEL_OK")
</pallas_src>

<mosaic_0001>
module attributes {stable_mosaic.version = 11 : i64} {
  func.func @_upsample_conv_kernel(%arg0: i32, %arg1: i32, %arg2: i32, %arg3: memref<1x18x18x4xbf16, #tpu.memory_space<vmem>>, %arg4: memref<3x3x4x16xbf16, #tpu.memory_space<vmem>>, %arg5: memref<1x16xf32, #tpu.memory_space<vmem>>, %arg6: memref<1x8x16x16xbf16, #tpu.memory_space<vmem>>) attributes {dimension_semantics = [#tpu.dimension_semantics<parallel>, #tpu.dimension_semantics<parallel>, #tpu.dimension_semantics<arbitrary>], iteration_bounds = array<i64: 2, 1, 2>, scalar_prefetch = 0 : i64, scratch_operands = 0 : i64, tpu.core_type = #tpu.core_type<tc>, window_params = [{transform_indices = @transform_0, window_bounds = array<i64: 1, 18, 18, 4>}, {transform_indices = @transform_1, window_bounds = array<i64: 3, 3, 4, 16>}, {transform_indices = @transform_2, window_bounds = array<i64: 1, 16>}, {transform_indices = @transform_3, window_bounds = array<i64: 1, 8, 16, 16>}]} {
    %c8_i32 = arith.constant 8 : i32
    %0 = arith.muli %arg2, %c8_i32 : i32
    %1 = tpu.assume_multiple %0, 8 : i32
    %c0 = arith.constant 0 : index
    %c0_0 = arith.constant 0 : index
    %2 = vector.load %arg5[%c0, %c0_0] : memref<1x16xf32, #tpu.memory_space<vmem>>, vector<1x16xf32>
    %3 = vector.shape_cast %2 : vector<1x16xf32> to vector<1x16xf32>
    %4 = vector.broadcast %3 : vector<1x16xf32> to vector<128x16xf32>
    %c0_i32 = arith.constant 0 : i32
    %5 = arith.addi %1, %c0_i32 : i32
    %c0_1 = arith.constant 0 : index
    %6 = arith.index_cast %5 : i32 to index
    %c0_2 = arith.constant 0 : index
    %c0_3 = arith.constant 0 : index
    %7 = vector.load %arg3[%c0_1, %6, %c0_2, %c0_3] : memref<1x18x18x4xbf16, #tpu.memory_space<vmem>>, vector<1x8x16x4xbf16>
    %8 = vector.shape_cast %7 : vector<1x8x16x4xbf16> to vector<8x16x4xbf16>
    %9 = vector.shape_cast %8 : vector<8x16x4xbf16> to vector<128x4xbf16>
    %c0_4 = arith.constant 0 : index
    %c0_5 = arith.constant 0 : index
    %c0_6 = arith.constant 0 : index
    %c0_7 = arith.constant 0 : index
    %10 = vector.load %arg4[%c0_4, %c0_5, %c0_6, %c0_7] : memref<3x3x4x16xbf16, #tpu.memory_space<vmem>>, vector<1x1x4x16xbf16>
    %11 = vector.shape_cast %10 : vector<1x1x4x16xbf16> to vector<4x16xbf16>
    %cst = arith.constant dense<0.000000e+00> : vector<128x16xf32>
    %12 = tpu.matmul %9, %11, %cst {dimension_numbers = #tpu.dot_dimension_numbers<[1], [0], [0], [1], [0, 0, 1, 1], [], []>} : vector<128x4xbf16>, vector<4x16xbf16>, vector<128x16xf32> -> vector<128x16xf32>
    %13 = arith.addf %4, %12 : vector<128x16xf32>
    %c0_i32_8 = arith.constant 0 : i32
    %14 = arith.addi %1, %c0_i32_8 : i32
    %c0_9 = arith.constant 0 : index
    %15 = arith.index_cast %14 : i32 to index
    %c1 = arith.constant 1 : index
    %c0_10 = arith.constant 0 : index
    %16 = vector.load %arg3[%c0_9, %15, %c1, %c0_10] : memref<1x18x18x4xbf16, #tpu.memory_space<vmem>>, vector<1x8x16x4xbf16>
    %17 = vector.shape_cast %16 : vector<1x8x16x4xbf16> to vector<8x16x4xbf16>
    %18 = vector.shape_cast %17 : vector<8x16x4xbf16> to vector<128x4xbf16>
    %c0_11 = arith.constant 0 : index
    %c1_12 = arith.constant 1 : index
    %c0_13 = arith.constant 0 : index
    %c0_14 = arith.constant 0 : index
    %19 = vector.load %arg4[%c0_11, %c1_12, %c0_13, %c0_14] : memref<3x3x4x16xbf16, #tpu.memory_space<vmem>>, vector<1x1x4x16xbf16>
    %20 = vector.shape_cast %19 : vector<1x1x4x16xbf16> to vector<4x16xbf16>
    %cst_15 = arith.constant dense<0.000000e+00> : vector<128x16xf32>
    %21 = tpu.matmul %18, %20, %cst_15 {dimension_numbers = #tpu.dot_dimension_numbers<[1], [0], [0], [1], [0, 0, 1, 1], [], []>} : vector<128x4xbf16>, vector<4x16xbf16>, vector<128x16xf32> -> vector<128x16xf32>
    %22 = arith.addf %13, %21 : vector<128x16xf32>
    %c0_i32_16 = arith.constant 0 : i32
    %23 = arith.addi %1, %c0_i32_16 : i32
    %c0_17 = arith.constant 0 : index
    %24 = arith.index_cast %23 : i32 to index
    %c2 = arith.constant 2 : index
    %c0_18 = arith.constant 0 : index
    %25 = vector.load %arg3[%c0_17, %24, %c2, %c0_18] : memref<1x18x18x4xbf16, #tpu.memory_space<vmem>>, vector<1x8x16x4xbf16>
    %26 = vector.shape_cast %25 : vector<1x8x16x4xbf16> to vector<8x16x4xbf16>
    %27 = vector.shape_cast %26 : vector<8x16x4xbf16> to vector<128x4xbf16>
    %c0_19 = arith.constant 0 : index
    %c2_20 = arith.constant 2 : index
    %c0_21 = arith.constant 0 : index
    %c0_22 = arith.constant 0 : index
    %28 = vector.load %arg4[%c0_19, %c2_20, %c0_21, %c0_22] : memref<3x3x4x16xbf16, #tpu.memory_space<vmem>>, vector<1x1x4x16xbf16>
    %29 = vector.shape_cast %28 : vector<1x1x4x16xbf16> to vector<4x16xbf16>
    %cst_23 = arith.constant dense<0.000000e+00> : vector<128x16xf32>
    %30 = tpu.matmul %27, %29, %cst_23 {dimension_numbers = #tpu.dot_dimension_numbers<[1], [0], [0], [1], [0, 0, 1, 1], [], []>} : vector<128x4xbf16>, vector<4x16xbf16>, vector<128x16xf32> -> vector<128x16xf32>
    %31 = arith.addf %22, %30 : vector<128x16xf32>
    %c1_i32 = arith.constant 1 : i32
    %32 = arith.addi %1, %c1_i32 : i32
    %c0_24 = arith.constant 0 : index
    %33 = arith.index_cast %32 : i32 to index
    %c0_25 = arith.constant 0 : index
    %c0_26 = arith.constant 0 : index
    %34 = vector.load %arg3[%c0_24, %33, %c0_25, %c0_26] : memref<1x18x18x4xbf16, #tpu.memory_space<vmem>>, vector<1x8x16x4xbf16>
    %35 = vector.shape_cast %34 : vector<1x8x16x4xbf16> to vector<8x16x4xbf16>
    %36 = vector.shape_cast %35 : vector<8x16x4xbf16> to vector<128x4xbf16>
    %c1_27 = arith.constant 1 : index
    %c0_28 = arith.constant 0 : index
    %c0_29 = arith.constant 0 : index
    %c0_30 = arith.constant 0 : index
    %37 = vector.load %arg4[%c1_27, %c0_28, %c0_29, %c0_30] : memref<3x3x4x16xbf16, #tpu.memory_space<vmem>>, vector<1x1x4x16xbf16>
    %38 = vector.shape_cast %37 : vector<1x1x4x16xbf16> to vector<4x16xbf16>
    %cst_31 = arith.constant dense<0.000000e+00> : vector<128x16xf32>
    %39 = tpu.matmul %36, %38, %cst_31 {dimension_numbers = #tpu.dot_dimension_numbers<[1], [0], [0], [1], [0, 0, 1, 1], [], []>} : vector<128x4xbf16>, vector<4x16xbf16>, vector<128x16xf32> -> vector<128x16xf32>
    %40 = arith.addf %31, %39 : vector<128x16xf32>
    %c1_i32_32 = arith.constant 1 : i32
    %41 = arith.addi %1, %c1_i32_32 : i32
    %c0_33 = arith.constant 0 : index
    %42 = arith.index_cast %41 : i32 to index
    %c1_34 = arith.constant 1 : index
    %c0_35 = arith.constant 0 : index
    %43 = vector.load %arg3[%c0_33, %42, %c1_34, %c0_35] : memref<1x18x18x4xbf16, #tpu.memory_space<vmem>>, vector<1x8x16x4xbf16>
    %44 = vector.shape_cast %43 : vector<1x8x16x4xbf16> to vector<8x16x4xbf16>
    %45 = vector.shape_cast %44 : vector<8x16x4xbf16> to vector<128x4xbf16>
    %c1_36 = arith.constant 1 : index
    %c1_37 = arith.constant 1 : index
    %c0_38 = arith.constant 0 : index
    %c0_39 = arith.constant 0 : index
    %46 = vector.load %arg4[%c1_36, %c1_37, %c0_38, %c0_39] : memref<3x3x4x16xbf16, #tpu.memory_space<vmem>>, vector<1x1x4x16xbf16>
    %47 = vector.shape_cast %46 : vector<1x1x4x16xbf16> to vector<4x16xbf16>
    %cst_40 = arith.constant dense<0.000000e+00> : vector<128x16xf32>
    %48 = tpu.matmul %45, %47, %cst_40 {dimension_numbers = #tpu.dot_dimension_numbers<[1], [0], [0], [1], [0, 0, 1, 1], [], []>} : vector<128x4xbf16>, vector<4x16xbf16>, vector<128x16xf32> -> vector<128x16xf32>
    %49 = arith.addf %40, %48 : vector<128x16xf32>
    %c1_i32_41 = arith.constant 1 : i32
    %50 = arith.addi %1, %c1_i32_41 : i32
    %c0_42 = arith.constant 0 : index
    %51 = arith.index_cast %50 : i32 to index
    %c2_43 = arith.constant 2 : index
    %c0_44 = arith.constant 0 : index
    %52 = vector.load %arg3[%c0_42, %51, %c2_43, %c0_44] : memref<1x18x18x4xbf16, #tpu.memory_space<vmem>>, vector<1x8x16x4xbf16>
    %53 = vector.shape_cast %52 : vector<1x8x16x4xbf16> to vector<8x16x4xbf16>
    %54 = vector.shape_cast %53 : vector<8x16x4xbf16> to vector<128x4xbf16>
    %c1_45 = arith.constant 1 : index
    %c2_46 = arith.constant 2 : index
    %c0_47 = arith.constant 0 : index
    %c0_48 = arith.constant 0 : index
    %55 = vector.load %arg4[%c1_45, %c2_46, %c0_47, %c0_48] : memref<3x3x4x16xbf16, #tpu.memory_space<vmem>>, vector<1x1x4x16xbf16>
    %56 = vector.shape_cast %55 : vector<1x1x4x16xbf16> to vector<4x16xbf16>
    %cst_49 = arith.constant dense<0.000000e+00> : vector<128x16xf32>
    %57 = tpu.matmul %54, %56, %cst_49 {dimension_numbers = #tpu.dot_dimension_numbers<[1], [0], [0], [1], [0, 0, 1, 1], [], []>} : vector<128x4xbf16>, vector<4x16xbf16>, vector<128x16xf32> -> vector<128x16xf32>
    %58 = arith.addf %49, %57 : vector<128x16xf32>
    %c2_i32 = arith.constant 2 : i32
    %59 = arith.addi %1, %c2_i32 : i32
    %c0_50 = arith.constant 0 : index
    %60 = arith.index_cast %59 : i32 to index
    %c0_51 = arith.constant 0 : index
    %c0_52 = arith.constant 0 : index
    %61 = vector.load %arg3[%c0_50, %60, %c0_51, %c0_52] : memref<1x18x18x4xbf16, #tpu.memory_space<vmem>>, vector<1x8x16x4xbf16>
    %62 = vector.shape_cast %61 : vector<1x8x16x4xbf16> to vector<8x16x4xbf16>
    %63 = vector.shape_cast %62 : vector<8x16x4xbf16> to vector<128x4xbf16>
    %c2_53 = arith.constant 2 : index
    %c0_54 = arith.constant 0 : index
    %c0_55 = arith.constant 0 : index
    %c0_56 = arith.constant 0 : index
    %64 = vector.load %arg4[%c2_53, %c0_54, %c0_55, %c0_56] : memref<3x3x4x16xbf16, #tpu.memory_space<vmem>>, vector<1x1x4x16xbf16>
    %65 = vector.shape_cast %64 : vector<1x1x4x16xbf16> to vector<4x16xbf16>
    %cst_57 = arith.constant dense<0.000000e+00> : vector<128x16xf32>
    %66 = tpu.matmul %63, %65, %cst_57 {dimension_numbers = #tpu.dot_dimension_numbers<[1], [0], [0], [1], [0, 0, 1, 1], [], []>} : vector<128x4xbf16>, vector<4x16xbf16>, vector<128x16xf32> -> vector<128x16xf32>
    %67 = arith.addf %58, %66 : vector<128x16xf32>
    %c2_i32_58 = arith.constant 2 : i32
    %68 = arith.addi %1, %c2_i32_58 : i32
    %c0_59 = arith.constant 0 : index
    %69 = arith.index_cast %68 : i32 to index
    %c1_60 = arith.constant 1 : index
    %c0_61 = arith.constant 0 : index
    %70 = vector.load %arg3[%c0_59, %69, %c1_60, %c0_61] : memref<1x18x18x4xbf16, #tpu.memory_space<vmem>>, vector<1x8x16x4xbf16>
    %71 = vector.shape_cast %70 : vector<1x8x16x4xbf16> to vector<8x16x4xbf16>
    %72 = vector.shape_cast %71 : vector<8x16x4xbf16> to vector<128x4xbf16>
    %c2_62 = arith.constant 2 : index
    %c1_63 = arith.constant 1 : index
    %c0_64 = arith.constant 0 : index
    %c0_65 = arith.constant 0 : index
    %73 = vector.load %arg4[%c2_62, %c1_63, %c0_64, %c0_65] : memref<3x3x4x16xbf16, #tpu.memory_space<vmem>>, vector<1x1x4x16xbf16>
    %74 = vector.shape_cast %73 : vector<1x1x4x16xbf16> to vector<4x16xbf16>
    %cst_66 = arith.constant dense<0.000000e+00> : vector<128x16xf32>
    %75 = tpu.matmul %72, %74, %cst_66 {dimension_numbers = #tpu.dot_dimension_numbers<[1], [0], [0], [1], [0, 0, 1, 1], [], []>} : vector<128x4xbf16>, vector<4x16xbf16>, vector<128x16xf32> -> vector<128x16xf32>
    %76 = arith.addf %67, %75 : vector<128x16xf32>
    %c2_i32_67 = arith.constant 2 : i32
    %77 = arith.addi %1, %c2_i32_67 : i32
    %c0_68 = arith.constant 0 : index
    %78 = arith.index_cast %77 : i32 to index
    %c2_69 = arith.constant 2 : index
    %c0_70 = arith.constant 0 : index
    %79 = vector.load %arg3[%c0_68, %78, %c2_69, %c0_70] : memref<1x18x18x4xbf16, #tpu.memory_space<vmem>>, vector<1x8x16x4xbf16>
    %80 = vector.shape_cast %79 : vector<1x8x16x4xbf16> to vector<8x16x4xbf16>
    %81 = vector.shape_cast %80 : vector<8x16x4xbf16> to vector<128x4xbf16>
    %c2_71 = arith.constant 2 : index
    %c2_72 = arith.constant 2 : index
    %c0_73 = arith.constant 0 : index
    %c0_74 = arith.constant 0 : index
    %82 = vector.load %arg4[%c2_71, %c2_72, %c0_73, %c0_74] : memref<3x3x4x16xbf16, #tpu.memory_space<vmem>>, vector<1x1x4x16xbf16>
    %83 = vector.shape_cast %82 : vector<1x1x4x16xbf16> to vector<4x16xbf16>
    %cst_75 = arith.constant dense<0.000000e+00> : vector<128x16xf32>
    %84 = tpu.matmul %81, %83, %cst_75 {dimension_numbers = #tpu.dot_dimension_numbers<[1], [0], [0], [1], [0, 0, 1, 1], [], []>} : vector<128x4xbf16>, vector<4x16xbf16>, vector<128x16xf32> -> vector<128x16xf32>
    %85 = arith.addf %76, %84 : vector<128x16xf32>
    %86 = vector.shape_cast %85 : vector<128x16xf32> to vector<8x16x16xf32>
    %87 = arith.truncf %86 : vector<8x16x16xf32> to vector<8x16x16xbf16>
    %c0_76 = arith.constant 0 : index
    %c0_77 = arith.constant 0 : index
    %c0_78 = arith.constant 0 : index
    %c0_79 = arith.constant 0 : index
    %88 = vector.load %arg6[%c0_76, %c0_77, %c0_78, %c0_79] : memref<1x8x16x16xbf16, #tpu.memory_space<vmem>>, vector<1x8x16x16xbf16>
    %89 = vector.shape_cast %88 : vector<1x8x16x16xbf16> to vector<8x16x16xbf16>
    %90 = vector.shape_cast %87 : vector<8x16x16xbf16> to vector<1x8x16x16xbf16>
    tpu.vector_store %arg6[%c0_76, %c0_77, %c0_78, %c0_79], %90 {strides = array<i32>} : memref<1x8x16x16xbf16, #tpu.memory_space<vmem>>, vector<1x8x16x16xbf16>,
    return
  }
  func.func @transform_0(%arg0: i32, %arg1: i32, %arg2: i32) -> (i32, i32, i32, i32) {
    %c0_i32 = arith.constant 0 : i32
    %c0_i32_0 = arith.constant 0 : i32
    %c0_i32_1 = arith.constant 0 : i32
    %c0_i32_2 = arith.constant 0 : i32
    return %arg0, %c0_i32, %c0_i32_0, %c0_i32_1 : i32, i32, i32, i32
  }
  func.func @transform_1(%arg0: i32, %arg1: i32, %arg2: i32) -> (i32, i32, i32, i32) {
    %c0_i32 = arith.constant 0 : i32
    %c0_i32_0 = arith.constant 0 : i32
    %c0_i32_1 = arith.constant 0 : i32
    %c0_i32_2 = arith.constant 0 : i32
    return %c0_i32, %c0_i32_0, %c0_i32_1, %arg1 : i32, i32, i32, i32
  }
  func.func @transform_2(%arg0: i32, %arg1: i32, %arg2: i32) -> (i32, i32) {
    %c0_i32 = arith.constant 0 : i32
    %c0_i32_0 = arith.constant 0 : i32
    return %c0_i32, %arg1 : i32, i32
  }
  func.func @transform_3(%arg0: i32, %arg1: i32, %arg2: i32) -> (i32, i32, i32, i32) {
    %c0_i32 = arith.constant 0 : i32
    %c0_i32_0 = arith.constant 0 : i32
    return %arg0, %arg2, %c0_i32, %arg1 : i32, i32, i32, i32
  }
}

</mosaic_0001>

<llo_original>
// kernel: tile.8
$region0: #{tile.8}
  #allocation0 [shape = 's32[1]{0}', space=sflag, size = 0x4, scoped, tag = 'scoped memory for tile.8']
  %s0 = inlined_call_operand.vmem [shape: f32[4], index: 0, kind: input, shape index: {}]
  %s1 = inlined_call_operand.vmem [shape: f32[4,4], index: 1, kind: output, shape index: {}]
  // Predicated region
  $region2: #{tile.8} parent=0 // pred_check
    _
  $region3: #{tile.8} parent=0 // pred_check_branch
    %3 = sbr.rel (0) target = $region5
  $region4: #{tile.8} parent=0 // pred_region
    _
  $region5: #{tile.8} parent=0 // pred_fallthru
    _
  %v4 = vld [vmem:[%s0] ss:$0 sm:$0xff]
  %5 = vst [vmem:[%s1] sm:$0xf] %v4

// kernel: tile.9
$region0: #{tile.9}
  %s0 = inlined_call_operand.vmem [shape: f32[4,4], index: 0, kind: input, shape index: {}]
  %s1 = inlined_call_operand.vmem [shape: f32[1,16], index: 1, kind: output, shape index: {}]
  $region1: #{tile.9} parent=0
    #allocation0 [shape = 'u8[4096]{0}', space=vmem, size = 0x1000, scoped, tag = 'scoped mem for output reshape']
    #allocation1 [shape = 'u8[4096]{0}', space=vmem, size = 0x1000, scoped, tag = 'scoped mem for input reshape']
    %s3 = sshll.u32 1, 4
    %s4 = ssub.s32 %s3, 1
    %v5 = vld [vmem:[%s0] sm:%s4]
    %6 = vst [vmem:[#allocation1] sm:%s4] %v5
    %v7 = vld [vmem:[#allocation1] sm:$0x1]
    %vm8 = vcmask 31744
    %9 = vst.msk [vmem:[#allocation0] sm:$0x1] %vm8, %v7
    %s10 = scalar_lea.vmem [#allocation1], 3
    %v11 = vld [vmem:[%s10] sm:$0x1]
    %12 = vrot.lane.b32.xlu0 %v11, 12
    %v13 = vpop.permute.xlu0 %12
    %vm14 = vcmask 130144
    %15 = vst.msk [vmem:[#allocation0] sm:$0x1] %vm14, %v13
    %s16 = scalar_lea.vmem [#allocation1], 2
    %v17 = vld [vmem:[%s16] sm:$0x1]
    %18 = vrot.lane.b32.xlu0 %v17, 8
    %v19 = vpop.permute.xlu0 %18
    %vm20 = vcmask 97344
    %21 = vst.msk [vmem:[#allocation0] sm:$0x1] %vm20, %v19
    %s22 = scalar_lea.vmem [#allocation1], 1
    %v23 = vld [vmem:[%s22] sm:$0x1]
    %24 = vrot.lane.b32.xlu0 %v23, 4
    %v25 = vpop.permute.xlu0 %24
    %vm26 = vcmask 64544
    %27 = vst.msk [vmem:[#allocation0] sm:$0x1] %vm26, %v25
    %s29 = sshll.u32 1, 1
    %s30 = ssub.s32 %s29, 1
    %v32 = vld [vmem:[#allocation0] sm:%s30]
    %s33 = sshll.u32 1, 1
    %s34 = ssub.s32 %s33, 1
    %35 = vst [vmem:[%s1] sm:%s34] %v32

// kernel: upsample_forward.1
$region0: #{upsample_forward.1}
  #allocation0 [shape = 'u32[]', space=smem, size = 0x4, offset = 0x4, fixed_abs, tag = 'smem constant byte address 0x4 - core index']
  #allocation1 [shape = 'u32[144,128]{1,0:T(1,128)}', space=vmem, size = 0x12000, scoped, tag = 'internal scratch']
  %s0 = inlined_call_operand.vmem [shape: bf16[2,18,18,4], index: 0, kind: input, shape index: {}]
  %s1 = inlined_call_operand.vmem [shape: bf16[3,3,4,16], index: 1, kind: input, shape index: {}]
  %s2 = inlined_call_operand.vmem [shape: f32[1,16], index: 2, kind: input, shape index: {}]
  %s3 = inlined_call_operand.vmem [shape: bf16[2,16,16,16], index: 3, kind: output, shape index: {}]
  %s4 = sld [smem:[#allocation0]]
  $region45: #{upsample_forward.1} parent=0
    _
  %s6 = ssub.s32 1, %s4
  %s7 = scalar_select 0, %s6, %s4
  loop: start=0, step=1, limit=6
  $region2: #{upsample_forward.1} parent=0 // loop_pre_header
    _
  $region3: #{upsample_forward.1} parent=0 // loop_header
    %s9 = sphi 0, %s13
    %p10 = scmp.ge.s32.totalorder %s9, 6
    %s16 = sphi 0, %s35
    %s17 = sphi 0, %s31
    %s18 = sphi 0, %s27
    %s19 = sphi 0, %s16
    %s20 = sphi 0, %s17
    %s21 = sphi 0, %s18
    %s22 = sphi 0, %s19
    %s23 = sphi 0, %s20
    %s24 = sphi 0, %s21
    %s38 = sphi 0, %s40
    %s41 = sphi 0, %s38
    %s42 = sphi 0, %s41
    %s58 = sphi 0, %s42
    %s64 = sphi 0, %s66
    %s67 = sphi 0, %s64
    %s68 = sphi 0, %s67
    %s84 = sphi 0, %s68
    %s90 = sphi 0, %s92
    %s93 = sphi 0, %s90
    %s94 = sphi 0, %s93
    %s110 = sphi 0, %s94
    %s120 = sphi 0, %s122
    %s123 = sphi 0, %s120
    %s124 = sphi 0, %s123
    %s140 = sphi 0, %s124
  $region4: #{upsample_forward.1} parent=0 // loop_header_branch
    %12 = sbr.rel (%p10) target = $region8
  $region5: #{upsample_forward.1} parent=0 // loop_body
    %s14 = ssub.s32 %s9, 1
    %s15 = ssub.s32 %s9, 2
    %s25 = sadd.s32 1, %s18
    %p26 = scmp.ge.s32.totalorder %s25, 2
    %s27 = scalar_select %p26, 0, %s25
    %s28 = sadd.s32 1, %s17
    %s29 = scalar_select %p26, %s28, %s17
    %p30 = scmp.ge.s32.totalorder %s29, 1
    %s31 = scalar_select %p30, 0, %s29
    %s32 = sadd.s32 1, %s16
    %s33 = scalar_select %p30, %s32, %s16
    %p34 = scmp.ge.s32.totalorder %s33, 2
    %s35 = scalar_select %p34, 0, %s33
    %s36 = ssub.s32 %s16, %s35
    %p37 = scmp.eq.s32.totalorder %s36, 0
    %s39 = sadd.s32 %s38, 1
    %s40 = scalar_select %p37, %s38, %s39
    %p43 = pneg %p37
    %p44 = scmp.eq.s32.totalorder %s9, 3
    %p45 = por %p43, %p44
    %p46 = scmp.ne.s32.totalorder %s38, %s41
    %p47 = scmp.eq.s32.totalorder %s9, 0
    %p48 = por %p46, %p47
    %p49 = scmp.ne.s32.totalorder %s38, %s41
    %p50 = scmp.eq.s32.totalorder %s14, 3
    %p51 = por %p49, %p50
    %p52 = scmp.ne.s32.totalorder %s41, %s42
    %p53 = scmp.eq.s32.totalorder %s14, 0
    %p54 = por %p52, %p53
    %p55 = scmp.ne.s32.totalorder %s41, %s42
    %p56 = scmp.eq.s32.totalorder %s15, 3
    %p57 = por %p55, %p56
    %p59 = scmp.ne.s32.totalorder %s42, %s58
    %p60 = scmp.eq.s32.totalorder %s15, 0
    %p61 = por %p59, %p60
    %s62 = ssub.s32 %s17, %s31
    %p63 = scmp.eq.s32.totalorder %s62, 0
    %s65 = sadd.s32 %s64, 1
    %s66 = scalar_select %p63, %s64, %s65
    %p69 = pneg %p63
    %p70 = scmp.eq.s32.totalorder %s9, 3
    %p71 = por %p69, %p70
    %p72 = scmp.ne.s32.totalorder %s64, %s67
    %p73 = scmp.eq.s32.totalorder %s9, 0
    %p74 = por %p72, %p73
    %p75 = scmp.ne.s32.totalorder %s64, %s67
    %p76 = scmp.eq.s32.totalorder %s14, 3
    %p77 = por %p75, %p76
    %p78 = scmp.ne.s32.totalorder %s67, %s68
    %p79 = scmp.eq.s32.totalorder %s14, 0
    %p80 = por %p78, %p79
    %p81 = scmp.ne.s32.totalorder %s67, %s68
    %p82 = scmp.eq.s32.totalorder %s15, 3
    %p83 = por %p81, %p82
    %p85 = scmp.ne.s32.totalorder %s68, %s84
    %p86 = scmp.eq.s32.totalorder %s15, 0
    %p87 = por %p85, %p86
    %s88 = ssub.s32 %s17, %s31
    %p89 = scmp.eq.s32.totalorder %s88, 0
    %s91 = sadd.s32 %s90, 1
    %s92 = scalar_select %p89, %s90, %s91
    %p95 = pneg %p89
    %p96 = scmp.eq.s32.totalorder %s9, 3
    %p97 = por %p95, %p96
    %p98 = scmp.ne.s32.totalorder %s90, %s93
    %p99 = scmp.eq.s32.totalorder %s9, 0
    %p100 = por %p98, %p99
    %p101 = scmp.ne.s32.totalorder %s90, %s93
    %p102 = scmp.eq.s32.totalorder %s14, 3
    %p103 = por %p101, %p102
    %p104 = scmp.ne.s32.totalorder %s93, %s94
    %p105 = scmp.eq.s32.totalorder %s14, 0
    %p106 = por %p104, %p105
    %p107 = scmp.ne.s32.totalorder %s93, %s94
    %p108 = scmp.eq.s32.totalorder %s15, 3
    %p109 = por %p107, %p108
    %p111 = scmp.ne.s32.totalorder %s94, %s110
    %p112 = scmp.eq.s32.totalorder %s15, 0
    %p113 = por %p111, %p112
    %s114 = ssub.s32 %s16, %s35
    %s115 = ssub.s32 %s18, %s27
    %s116 = sor.u32 %s114, %s115
    %s117 = ssub.s32 %s17, %s31
    %s118 = sor.u32 %s116, %s117
    %p119 = scmp.eq.s32.totalorder %s118, 0
    %s121 = sadd.s32 %s120, 1
    %s122 = scalar_select %p119, %s120, %s121
    %p125 = pneg %p119
    %p126 = scmp.eq.s32.totalorder %s9, 3
    %p127 = por %p125, %p126
    %p128 = scmp.ne.s32.totalorder %s120, %s123
    %p129 = scmp.eq.s32.totalorder %s9, 0
    %p130 = por %p128, %p129
    %p131 = scmp.ne.s32.totalorder %s120, %s123
    %p132 = scmp.eq.s32.totalorder %s14, 3
    %p133 = por %p131, %p132
    %p134 = scmp.ne.s32.totalorder %s123, %s124
    %p135 = scmp.eq.s32.totalorder %s14, 0
    %p136 = por %p134, %p135
    %p137 = scmp.ne.s32.totalorder %s123, %s124
    %p138 = scmp.eq.s32.totalorder %s15, 3
    %p139 = por %p137, %p138
    %p141 = scmp.ne.s32.totalorder %s124, %s140
    %p142 = scmp.eq.s32.totalorder %s15, 0
    %p143 = por %p141, %p142
    %p144 = scmp.le.s32.totalorder 1, %s9
    %p145 = scmp.lt.s32.totalorder %s9, 5
    %p146 = pnand %p144, %p145
    %p147 = pneg %p146
    // Predicated region
    $region9: #{upsample_forward.1} parent=5 // pred_check
      _
    $region10: #{upsample_forward.1} parent=5 // pred_check_branch
      %149 = sbr.rel (%p146) target = $region12
    $region11: #{upsample_forward.1} parent=5 // pred_region
      %s150 = ssub.s32 %s9, 1
      // Predicated region
      $region13: #{upsample_forward.1} parent=11 // pred_check
        %p151 = pneg %p80
      $region14: #{upsample_forward.1} parent=11 // pred_check_branch
        %153 = sbr.rel (%p151) target = $region16
      $region15: #{upsample_forward.1} parent=11 // pred_region
        %p154 = scmp.lt.s32.totalorder %s20, 0
        %s155 = scalar_select %p154, %s20, 0
        %s156 = smul.addr %s155, 2
        %s157 = scalar_lea.vmem %s1, %s156
      $region16: #{upsample_forward.1} parent=11 // pred_fallthru
        _
      // Predicated region
      $region17: #{upsample_forward.1} parent=11 // pred_check
        %p158 = pneg %p106
      $region18: #{upsample_forward.1} parent=11 // pred_check_branch
        %160 = sbr.rel (%p158) target = $region20
      $region19: #{upsample_forward.1} parent=11 // pred_region
        %p161 = scmp.lt.s32.totalorder %s20, 0
        %s162 = scalar_select %p161, %s20, 0
        %s163 = scalar_lea.vmem %s2, %s162
      $region20: #{upsample_forward.1} parent=11 // pred_fallthru
        _
    $region12: #{upsample_forward.1} parent=5 // pred_fallthru
      _
    %p164 = scmp.lt.s32.totalorder %s9, 4
    // Predicated region
    $region21: #{upsample_forward.1} parent=5 // pred_check
      %p165 = pneg %p164
    $region22: #{upsample_forward.1} parent=5 // pred_check_branch
      %167 = sbr.rel (%p165) target = $region24
    $region23: #{upsample_forward.1} parent=5 // pred_region
      // Predicated region
      $region25: #{upsample_forward.1} parent=23 // pred_check
        %p168 = pneg %p48
      $region26: #{upsample_forward.1} parent=23 // pred_check_branch
        %170 = sbr.rel (%p168) target = $region28
      $region27: #{upsample_forward.1} parent=23 // pred_region
        %p171 = scmp.lt.s32.totalorder %s16, 1
        %s172 = scalar_select %p171, %s16, 1
        %s173 = smul.addr %s172, 54
        %s174 = smul.addr %s173, 4
        %s175 = scalar_lea.vmem %s0, %s174
      $region28: #{upsample_forward.1} parent=23 // pred_fallthru
        _
    $region24: #{upsample_forward.1} parent=5 // pred_fallthru
      _
    %p176 = scmp.le.s32.totalorder 1, %s9
    %p177 = scmp.lt.s32.totalorder %s9, 5
    %p178 = pnand %p176, %p177
    %p179 = pneg %p178
    // Predicated region
    $region29: #{upsample_forward.1} parent=5 // pred_check
      _
    $region30: #{upsample_forward.1} parent=5 // pred_check_branch
      %181 = sbr.rel (%p178) target = $region32
    $region31: #{upsample_forward.1} parent=5 // pred_region
      %s182 = ssub.s32 %s9, 1
      %p183 = scmp.lt.s32.totalorder %s19, 1
      %s184 = scalar_select %p183, %s19, 1
      %s185 = smul.addr %s184, 54
      %s186 = smul.addr %s185, 4
      %s187 = scalar_lea.vmem %s0, %s186
      %p188 = pneg %p54
      %p189 = pneg %p51
      %p190 = scmp.lt.s32.totalorder %s20, 0
      %s191 = scalar_select %p190, %s20, 0
      %s192 = smul.addr %s191, 2
      %s193 = scalar_lea.vmem %s1, %s192
      %p194 = pneg %p80
      %p195 = pneg %p77
      %p196 = scmp.lt.s32.totalorder %s20, 0
      %s197 = scalar_select %p196, %s20, 0
      %s198 = scalar_lea.vmem %s2, %s197
      %p199 = pneg %p106
      %p200 = pneg %p103
      %p201 = pneg %p136
      %p202 = pneg %p133
      %s203 = smul.u32 8, %s21
      %p204 = scmp.lt.s32.totalorder %s19, 1
      %s205 = scalar_select %p204, %s19, 1
      %p206 = scmp.lt.s32.totalorder %s203, 15
      %s207 = scalar_select %p206, %s203, 15
      %p208 = scmp.lt.s32.totalorder %s20, 0
      %s209 = scalar_select %p208, %s20, 0
      %s210 = smul.addr %s207, 2
      %s211 = sadd.s32 %s209, %s210
      %s212 = smul.addr %s205, 32
      %s213 = sadd.s32 %s211, %s212
      %s214 = smul.addr %s213, 4
      %s215 = scalar_lea.vmem %s3, %s214
      %p216 = scmp.lt.s32.totalorder %s19, 1
      %s217 = scalar_select %p216, %s19, 1
      %s218 = smul.addr %s217, 54
      %s219 = smul.addr %s218, 4
      %s220 = scalar_lea.vmem %s0, %s219
      %p221 = scmp.lt.s32.totalorder %s20, 0
      %s222 = scalar_select %p221, %s20, 0
      %s223 = smul.addr %s222, 2
      %s224 = scalar_lea.vmem %s1, %s223
      %p225 = scmp.lt.s32.totalorder %s20, 0
      %s226 = scalar_select %p225, %s20, 0
      %s227 = scalar_lea.vmem %s2, %s226
      %s228 = smul.u32 8, %s21
      %p229 = scmp.lt.s32.totalorder %s19, 1
      %s230 = scalar_select %p229, %s19, 1
      %p231 = scmp.lt.s32.totalorder %s228, 15
      %s232 = scalar_select %p231, %s228, 15
      %p233 = scmp.lt.s32.totalorder %s20, 0
      %s234 = scalar_select %p233, %s20, 0
      %s235 = smul.addr %s232, 2
      %s236 = sadd.s32 %s234, %s235
      %s237 = smul.addr %s230, 32
      %s238 = sadd.s32 %s236, %s237
      %s239 = smul.addr %s238, 4
      %s240 = scalar_lea.vmem %s3, %s239
      %s241 = smul.u32 8, %s21
      %s243 = smul.u32 %s21, 8
      %v244 = vld [vmem:[%s227] sm:$0x1]
      %v246 = vlaneseq
      %v247 = vshrl.u32 %v246, 7
      %v248 = vsub.s32 0, %v247
      %v249 = vrot.slane %v244, %v248
      %s251 = smul.u32 %s243, 3
      %s252 = smul.addr %s251, 4
      %s253 = scalar_lea.vmem %s220, %s252
      %v254 = vld [vmem:[%s253] sm:$0xf]
      %v255 = vld [vmem:[%s253 + $0x4] sm:$0xf]
      %v256 = vld [vmem:[%s253 + $0xc] sm:$0xf]
      %v257 = vld [vmem:[%s253 + $0x10] sm:$0xf]
      %v258 = vld [vmem:[%s253 + $0x18] sm:$0xf]
      %v259 = vld [vmem:[%s253 + $0x1c] sm:$0xf]
      %v260 = vld [vmem:[%s253 + $0x24] sm:$0xf]
      %v261 = vld [vmem:[%s253 + $0x28] sm:$0xf]
      %v262 = vld [vmem:[%s253 + $0x30] sm:$0xf]
      %v263 = vld [vmem:[%s253 + $0x34] sm:$0xf]
      %v264 = vld [vmem:[%s253 + $0x3c] sm:$0xf]
      %v265 = vld [vmem:[%s253 + $0x40] sm:$0xf]
      %v266 = vld [vmem:[%s253 + $0x48] sm:$0xf]
      %v267 = vld [vmem:[%s253 + $0x4c] sm:$0xf]
      %v268 = vld [vmem:[%s253 + $0x54] sm:$0xf]
      %v269 = vld [vmem:[%s253 + $0x58] sm:$0xf]
      %v270 = vld [vmem:[%s224] sm:$0x3]
      %v287 = vunpack.c.l.b16 %v254
      %v288 = vunpack.c.l.b16 %v255
      %v289 = vunpack.c.l.b16 %v256
      %v290 = vunpack.c.l.b16 %v257
      %v291 = vunpack.c.l.b16 %v258
      %v292 = vunpack.c.l.b16 %v259
      %v293 = vunpack.c.l.b16 %v260
      %v294 = vunpack.c.l.b16 %v261
      %v295 = vunpack.c.l.b16 %v262
      %v296 = vunpack.c.l.b16 %v263
      %v297 = vunpack.c.l.b16 %v264
      %v298 = vunpack.c.l.b16 %v265
      %v299 = vunpack.c.l.b16 %v266
      %v300 = vunpack.c.l.b16 %v267
      %v301 = vunpack.c.l.b16 %v268
      %v302 = vunpack.c.l.b16 %v269
      %v303 = vpack.c.b16 %v288, %v287
      %v304 = vpack.c.b16 %v290, %v289
      %v305 = vpack.c.b16 %v292, %v291
      %v306 = vpack.c.b16 %v294, %v293
      %v307 = vpack.c.b16 %v296, %v295
      %v308 = vpack.c.b16 %v298, %v297
      %v309 = vpack.c.b16 %v300, %v299
      %v310 = vpack.c.b16 %v302, %v301
      %vm311 = vcmask 31744
      %v313 = vsel %vm311, %v303, 0
      %v316 = vsel %vm311, %v304, 0
      %v319 = vsel %vm311, %v305, 0
      %v322 = vsel %vm311, %v306, 0
      %v325 = vsel %vm311, %v307, 0
      %v328 = vsel %vm311, %v308, 0
      %v331 = vsel %vm311, %v309, 0
      %v334 = vsel %vm311, %v310, 0
      %vm336 = vcmask 1041408
      %v338 = vsel %vm336, %v270, 0
      %340 = vmatprep.subr.bf16.mxu0 0
      %341 = vmatpush1.bf16.msra.mxu0 0
      %342 = vmatprep.subr.bf16.mxu0 0
      %343 = vmatpush1.bf16.msra.mxu0 0
      %344 = vmatprep.subr.bf16.mxu0 0
      %345 = vmatpush1.bf16.msra.mxu0 0
      %346 = vmatprep.subr.bf16.mxu0 0
      %347 = vmatpush1.bf16.msra.mxu0 0
      %348 = vmatprep.subr.bf16.mxu0 0
      %349 = vmatpush1.bf16.msra.mxu0 0
      %350 = vmatprep.subr.bf16.mxu0 0
      %351 = vmatpush1.bf16.msra.mxu0 0
      %352 = vmatprep.subr.bf16.mxu0 0
      %353 = vmatpush1.bf16.msra.mxu0 0
      %354 = vmatprep.subr.bf16.mxu0 0
      %355 = vmatpush1.bf16.msra.mxu0 %v338
      %356 = vmatprep.subr.bf16.mxu0 0
      %357 = vmatpush2.bf16.msra.mxu0 0
      %358 = vmatprep.subr.bf16.mxu0 0
      %359 = vmatpush2.bf16.msra.mxu0 0
      %360 = vmatprep.subr.bf16.mxu0 0
      %361 = vmatpush2.bf16.msra.mxu0 0
      %362 = vmatprep.subr.bf16.mxu0 0
      %363 = vmatpush2.bf16.msra.mxu0 0
      %364 = vmatprep.subr.bf16.mxu0 0
      %365 = vmatpush2.bf16.msra.mxu0 0
      %366 = vmatprep.subr.bf16.mxu0 0
      %367 = vmatpush2.bf16.msra.mxu0 0
      %368 = vmatprep.subr.bf16.mxu0 0
      %369 = vmatpush2.bf16.msra.mxu0 0
      %370 = vmatprep.subr.bf16.mxu0 0
      %371 = vmatpush2.bf16.msra.mxu0 0
      %372 = vmatprep.mubr.bf16.mxu0 0
      %373 = vmatmul.mubr.bf16.gmra.mxu0 %v313
      %v374 = vpop.f32.mrf.mxu0
      %v375 = vadd.f32 0.0, %v374
      %v376 = vpop.f32.mrf.mxu0
      %v377 = vpop.f32.mrf.mxu0
      %v378 = vadd.f32 0.0, %v377
      %v379 = vpop.f32.mrf.mxu0
      %380 = vmatprep.mubr.bf16.mxu0 0
      %381 = vmatmul.mubr.bf16.gmra.mxu0 %v316
      %v382 = vpop.f32.mrf.mxu0
      %v383 = vadd.f32 0.0, %v382
      %v384 = vpop.f32.mrf.mxu0
      %v385 = vpop.f32.mrf.mxu0
      %v386 = vadd.f32 0.0, %v385
      %v387 = vpop.f32.mrf.mxu0
      %388 = vmatprep.mubr.bf16.mxu0 0
      %389 = vmatmul.mubr.bf16.gmra.mxu0 %v319
      %v390 = vpop.f32.mrf.mxu0
      %v391 = vadd.f32 0.0, %v390
      %v392 = vpop.f32.mrf.mxu0
      %v393 = vpop.f32.mrf.mxu0
      %v394 = vadd.f32 0.0, %v393
      %v395 = vpop.f32.mrf.mxu0
      %396 = vmatprep.mubr.bf16.mxu0 0
      %397 = vmatmul.mubr.bf16.gmra.mxu0 %v322
      %v398 = vpop.f32.mrf.mxu0
      %v399 = vadd.f32 0.0, %v398
      %v400 = vpop.f32.mrf.mxu0
      %v401 = vpop.f32.mrf.mxu0
      %v402 = vadd.f32 0.0, %v401
      %v403 = vpop.f32.mrf.mxu0
      %404 = vmatprep.mubr.bf16.mxu0 0
      %405 = vmatmul.mubr.bf16.gmra.mxu0 %v325
      %v406 = vpop.f32.mrf.mxu0
      %v407 = vadd.f32 0.0, %v406
      %v408 = vpop.f32.mrf.mxu0
      %v409 = vpop.f32.mrf.mxu0
      %v410 = vadd.f32 0.0, %v409
      %v411 = vpop.f32.mrf.mxu0
      %412 = vmatprep.mubr.bf16.mxu0 0
      %413 = vmatmul.mubr.bf16.gmra.mxu0 %v328
      %v414 = vpop.f32.mrf.mxu0
      %v415 = vadd.f32 0.0, %v414
      %v416 = vpop.f32.mrf.mxu0
      %v417 = vpop.f32.mrf.mxu0
      %v418 = vadd.f32 0.0, %v417
      %v419 = vpop.f32.mrf.mxu0
      %420 = vmatprep.mubr.bf16.mxu0 0
      %421 = vmatmul.mubr.bf16.gmra.mxu0 %v331
      %v422 = vpop.f32.mrf.mxu0
      %v423 = vadd.f32 0.0, %v422
      %v424 = vpop.f32.mrf.mxu0
      %v425 = vpop.f32.mrf.mxu0
      %v426 = vadd.f32 0.0, %v425
      %v427 = vpop.f32.mrf.mxu0
      %428 = vmatprep.mubr.bf16.mxu0 0
      %429 = vmatmul.mubr.bf16.gmra.mxu0 %v334
      %v430 = vpop.f32.mrf.mxu0
      %v431 = vadd.f32 0.0, %v430
      %v432 = vpop.f32.mrf.mxu0
      %v433 = vpop.f32.mrf.mxu0
      %v434 = vadd.f32 0.0, %v433
      %v435 = vpop.f32.mrf.mxu0
      %436 = vdwg.mxu0
      %v437 = vadd.f32 %v249, %v375
      %v438 = vadd.f32 %v249, %v378
      %v439 = vadd.f32 %v249, %v383
      %v440 = vadd.f32 %v249, %v386
      %v441 = vadd.f32 %v249, %v391
      %v442 = vadd.f32 %v249, %v394
      %v443 = vadd.f32 %v249, %v399
      %v444 = vadd.f32 %v249, %v402
      %v445 = vadd.f32 %v249, %v407
      %v446 = vadd.f32 %v249, %v410
      %v447 = vadd.f32 %v249, %v415
      %v448 = vadd.f32 %v249, %v418
      %v449 = vadd.f32 %v249, %v423
      %v450 = vadd.f32 %v249, %v426
      %v451 = vadd.f32 %v249, %v431
      %v452 = vadd.f32 %v249, %v434
      %v453 = vld [vmem:[%s253] sm:$0xf]
      %v454 = vld [vmem:[%s253 + $0x4] sm:$0xf]
      %v455 = vld [vmem:[%s253 + $0x8] sm:$0x1]
      %v456 = vld [vmem:[%s253 + $0xc] sm:$0xf]
      %v457 = vld [vmem:[%s253 + $0x10] sm:$0xf]
      %v458 = vld [vmem:[%s253 + $0x14] sm:$0x1]
      %v459 = vld [vmem:[%s253 + $0x18] sm:$0xf]
      %v460 = vld [vmem:[%s253 + $0x1c] sm:$0xf]
      %v461 = vld [vmem:[%s253 + $0x20] sm:$0x1]
      %v462 = vld [vmem:[%s253 + $0x24] sm:$0xf]
      %v463 = vld [vmem:[%s253 + $0x28] sm:$0xf]
      %v464 = vld [vmem:[%s253 + $0x2c] sm:$0x1]
      %v465 = vld [vmem:[%s253 + $0x30] sm:$0xf]
      %v466 = vld [vmem:[%s253 + $0x34] sm:$0xf]
      %v467 = vld [vmem:[%s253 + $0x38] sm:$0x1]
      %v468 = vld [vmem:[%s253 + $0x3c] sm:$0xf]
      %v469 = vld [vmem:[%s253 + $0x40] sm:$0xf]
      %v470 = vld [vmem:[%s253 + $0x44] sm:$0x1]
      %v471 = vld [vmem:[%s253 + $0x48] sm:$0xf]
      %v472 = vld [vmem:[%s253 + $0x4c] sm:$0xf]
      %v473 = vld [vmem:[%s253 + $0x50] sm:$0x1]
      %v474 = vld [vmem:[%s253 + $0x54] sm:$0xf]
      %v475 = vld [vmem:[%s253 + $0x58] sm:$0xf]
      %v476 = vld [vmem:[%s253 + $0x5c] sm:$0x1]
      %vm477 = vsmask.f32 3328
      %vm478 = vsmask.f32 7440
      %vm479 = vmor %vm477, %vm478
      %v481 = vshrl.u32 %v453, 16
      %v483 = vrot.slane %v481, 4
      %v484 = vshll.u32 %v453, 16
      %v486 = vrot.slane %v484, 5
      %v487 = vor.u32 %v483, %v486
      %v488 = vrot.slane %v487, 4
      %v490 = vshll.u32 %v454, 16
      %v492 = vrot.slane %v490, 5
      %v493 = vsel %vm479, %v488, %v492
      %v494 = vshrl.u32 %v454, 16
      %v496 = vrot.slane %v494, 4
      %v497 = vor.u32 %v496, %v492
      %v498 = vrot.slane %v497, 4
      %v500 = vshll.u32 %v455, 16
      %v502 = vrot.slane %v500, 5
      %v503 = vsel %vm479, %v498, %v502
      %v505 = vshrl.u32 %v456, 16
      %v507 = vrot.slane %v505, 4
      %v508 = vshll.u32 %v456, 16
      %v510 = vrot.slane %v508, 5
      %v511 = vor.u32 %v507, %v510
      %v512 = vrot.slane %v511, 4
      %v514 = vshll.u32 %v457, 16
      %v516 = vrot.slane %v514, 5
      %v517 = vsel %vm479, %v512, %v516
      %v518 = vshrl.u32 %v457, 16
      %v520 = vrot.slane %v518, 4
      %v521 = vor.u32 %v520, %v516
      %v522 = vrot.slane %v521, 4
      %v524 = vshll.u32 %v458, 16
      %v526 = vrot.slane %v524, 5
      %v527 = vsel %vm479, %v522, %v526
      %v529 = vshrl.u32 %v459, 16
      %v531 = vrot.slane %v529, 4
      %v532 = vshll.u32 %v459, 16
      %v534 = vrot.slane %v532, 5
      %v535 = vor.u32 %v531, %v534
      %v536 = vrot.slane %v535, 4
      %v538 = vshll.u32 %v460, 16
      %v540 = vrot.slane %v538, 5
      %v541 = vsel %vm479, %v536, %v540
      %v542 = vshrl.u32 %v460, 16
      %v544 = vrot.slane %v542, 4
      %v545 = vor.u32 %v544, %v540
      %v546 = vrot.slane %v545, 4
      %v548 = vshll.u32 %v461, 16
      %v550 = vrot.slane %v548, 5
      %v551 = vsel %vm479, %v546, %v550
      %v553 = vshrl.u32 %v462, 16
      %v555 = vrot.slane %v553, 4
      %v556 = vshll.u32 %v462, 16
      %v558 = vrot.slane %v556, 5
      %v559 = vor.u32 %v555, %v558
      %v560 = vrot.slane %v559, 4
      %v562 = vshll.u32 %v463, 16
      %v564 = vrot.slane %v562, 5
      %v565 = vsel %vm479, %v560, %v564
      %v566 = vshrl.u32 %v463, 16
      %v568 = vrot.slane %v566, 4
      %v569 = vor.u32 %v568, %v564
      %v570 = vrot.slane %v569, 4
      %v572 = vshll.u32 %v464, 16
      %v574 = vrot.slane %v572, 5
      %v575 = vsel %vm479, %v570, %v574
      %v577 = vshrl.u32 %v465, 16
      %v579 = vrot.slane %v577, 4
      %v580 = vshll.u32 %v465, 16
      %v582 = vrot.slane %v580, 5
      %v583 = vor.u32 %v579, %v582
      %v584 = vrot.slane %v583, 4
      %v586 = vshll.u32 %v466, 16
      %v588 = vrot.slane %v586, 5
      %v589 = vsel %vm479, %v584, %v588
      %v590 = vshrl.u32 %v466, 16
      %v592 = vrot.slane %v590, 4
      %v593 = vor.u32 %v592, %v588
      %v594 = vrot.slane %v593, 4
      %v596 = vshll.u32 %v467, 16
      %v598 = vrot.slane %v596, 5
      %v599 = vsel %vm479, %v594, %v598
      %v601 = vshrl.u32 %v468, 16
      %v603 = vrot.slane %v601, 4
      %v604 = vshll.u32 %v468, 16
      %v606 = vrot.slane %v604, 5
      %v607 = vor.u32 %v603, %v606
      %v608 = vrot.slane %v607, 4
      %v610 = vshll.u32 %v469, 16
      %v612 = vrot.slane %v610, 5
      %v613 = vsel %vm479, %v608, %v612
      %v614 = vshrl.u32 %v469, 16
      %v616 = vrot.slane %v614, 4
      %v617 = vor.u32 %v616, %v612
      %v618 = vrot.slane %v617, 4
      %v620 = vshll.u32 %v470, 16
      %v622 = vrot.slane %v620, 5
      %v623 = vsel %vm479, %v618, %v622
      %v625 = vshrl.u32 %v471, 16
      %v627 = vrot.slane %v625, 4
      %v628 = vshll.u32 %v471, 16
      %v630 = vrot.slane %v628, 5
      %v631 = vor.u32 %v627, %v630
      %v632 = vrot.slane %v631, 4
      %v634 = vshll.u32 %v472, 16
      %v636 = vrot.slane %v634, 5
      %v637 = vsel %vm479, %v632, %v636
      %v638 = vshrl.u32 %v472, 16
      %v640 = vrot.slane %v638, 4
      %v641 = vor.u32 %v640, %v636
      %v642 = vrot.slane %v641, 4
      %v644 = vshll.u32 %v473, 16
      %v646 = vrot.slane %v644, 5
      %v647 = vsel %vm479, %v642, %v646
      %v649 = vshrl.u32 %v474, 16
      %v651 = vrot.slane %v649, 4
      %v652 = vshll.u32 %v474, 16
      %v654 = vrot.slane %v652, 5
      %v655 = vor.u32 %v651, %v654
      %v656 = vrot.slane %v655, 4
      %v658 = vshll.u32 %v475, 16
      %v660 = vrot.slane %v658, 5
      %v661 = vsel %vm479, %v656, %v660
      %v662 = vshrl.u32 %v475, 16
      %v664 = vrot.slane %v662, 4
      %v665 = vor.u32 %v664, %v660
      %v666 = vrot.slane %v665, 4
      %v668 = vshll.u32 %v476, 16
      %v670 = vrot.slane %v668, 5
      %v671 = vsel %vm479, %v666, %v670
      %s672 = scalar_lea.vmem %s224, 2
      %v673 = vld [vmem:[%s672] sm:$0x3]
      %v674 = vunpack.c.l.b16 %v493
      %v675 = vunpack.c.l.b16 %v503
      %v676 = vunpack.c.l.b16 %v517
      %v677 = vunpack.c.l.b16 %v527
      %v678 = vunpack.c.l.b16 %v541
      %v679 = vunpack.c.l.b16 %v551
      %v680 = vunpack.c.l.b16 %v565
      %v681 = vunpack.c.l.b16 %v575
      %v682 = vunpack.c.l.b16 %v589
      %v683 = vunpack.c.l.b16 %v599
      %v684 = vunpack.c.l.b16 %v613
      %v685 = vunpack.c.l.b16 %v623
      %v686 = vunpack.c.l.b16 %v637
      %v687 = vunpack.c.l.b16 %v647
      %v688 = vunpack.c.l.b16 %v661
      %v689 = vunpack.c.l.b16 %v671
      %v690 = vpack.c.b16 %v675, %v674
      %v691 = vpack.c.b16 %v677, %v676
      %v692 = vpack.c.b16 %v679, %v678
      %v693 = vpack.c.b16 %v681, %v680
      %v694 = vpack.c.b16 %v683, %v682
      %v695 = vpack.c.b16 %v685, %v684
      %v696 = vpack.c.b16 %v687, %v686
      %v697 = vpack.c.b16 %v689, %v688
      %v699 = vsel %vm311, %v690, 0
      %v702 = vsel %vm311, %v691, 0
      %v705 = vsel %vm311, %v692, 0
      %v708 = vsel %vm311, %v693, 0
      %v711 = vsel %vm311, %v694, 0
      %v714 = vsel %vm311, %v695, 0
      %v717 = vsel %vm311, %v696, 0
      %v720 = vsel %vm311, %v697, 0
      %v723 = vsel %vm336, %v673, 0
      %725 = vmatprep.subr.bf16.mxu0 0
      %726 = vmatpush1.bf16.msra.mxu0 0
      %727 = vmatprep.subr.bf16.mxu0 0
      %728 = vmatpush1.bf16.msra.mxu0 0
      %729 = vmatprep.subr.bf16.mxu0 0
      %730 = vmatpush1.bf16.msra.mxu0 0
      %731 = vmatprep.subr.bf16.mxu0 0
      %732 = vmatpush1.bf16.msra.mxu0 0
      %733 = vmatprep.subr.bf16.mxu0 0
      %734 = vmatpush1.bf16.msra.mxu0 0
      %735 = vmatprep.subr.bf16.mxu0 0
      %736 = vmatpush1.bf16.msra.mxu0 0
      %737 = vmatprep.subr.bf16.mxu0 0
      %738 = vmatpush1.bf16.msra.mxu0 0
      %739 = vmatprep.subr.bf16.mxu0 0
      %740 = vmatpush1.bf16.msra.mxu0 %v723
      %741 = vmatprep.subr.bf16.mxu0 0
      %742 = vmatpush2.bf16.msra.mxu0 0
      %743 = vmatprep.subr.bf16.mxu0 0
      %744 = vmatpush2.bf16.msra.mxu0 0
      %745 = vmatprep.subr.bf16.mxu0 0
      %746 = vmatpush2.bf16.msra.mxu0 0
      %747 = vmatprep.subr.bf16.mxu0 0
      %748 = vmatpush2.bf16.msra.mxu0 0
      %749 = vmatprep.subr.bf16.mxu0 0
      %750 = vmatpush2.bf16.msra.mxu0 0
      %751 = vmatprep.subr.bf16.mxu0 0
      %752 = vmatpush2.bf16.msra.mxu0 0
      %753 = vmatprep.subr.bf16.mxu0 0
      %754 = vmatpush2.bf16.msra.mxu0 0
      %755 = vmatprep.subr.bf16.mxu0 0
      %756 = vmatpush2.bf16.msra.mxu0 0
      %757 = vmatprep.mubr.bf16.mxu0 0
      %758 = vmatmul.mubr.bf16.gmra.mxu0 %v699
      %v759 = vpop.f32.mrf.mxu0
      %v760 = vadd.f32 0.0, %v759
      %v761 = vpop.f32.mrf.mxu0
      %v762 = vpop.f32.mrf.mxu0
      %v763 = vadd.f32 0.0, %v762
      %v764 = vpop.f32.mrf.mxu0
      %765 = vmatprep.mubr.bf16.mxu0 0
      %766 = vmatmul.mubr.bf16.gmra.mxu0 %v702
      %v767 = vpop.f32.mrf.mxu0
      %v768 = vadd.f32 0.0, %v767
      %v769 = vpop.f32.mrf.mxu0
      %v770 = vpop.f32.mrf.mxu0
      %v771 = vadd.f32 0.0, %v770
      %v772 = vpop.f32.mrf.mxu0
      %773 = vmatprep.mubr.bf16.mxu0 0
      %774 = vmatmul.mubr.bf16.gmra.mxu0 %v705
      %v775 = vpop.f32.mrf.mxu0
      %v776 = vadd.f32 0.0, %v775
      %v777 = vpop.f32.mrf.mxu0
      %v778 = vpop.f32.mrf.mxu0
      %v779 = vadd.f32 0.0, %v778
      %v780 = vpop.f32.mrf.mxu0
      %781 = vmatprep.mubr.bf16.mxu0 0
      %782 = vmatmul.mubr.bf16.gmra.mxu0 %v708
      %v783 = vpop.f32.mrf.mxu0
      %v784 = vadd.f32 0.0, %v783
      %v785 = vpop.f32.mrf.mxu0
      %v786 = vpop.f32.mrf.mxu0
      %v787 = vadd.f32 0.0, %v786
      %v788 = vpop.f32.mrf.mxu0
      %789 = vmatprep.mubr.bf16.mxu0 0
      %790 = vmatmul.mubr.bf16.gmra.mxu0 %v711
      %v791 = vpop.f32.mrf.mxu0
      %v792 = vadd.f32 0.0, %v791
      %v793 = vpop.f32.mrf.mxu0
      %v794 = vpop.f32.mrf.mxu0
      %v795 = vadd.f32 0.0, %v794
      %v796 = vpop.f32.mrf.mxu0
      %797 = vmatprep.mubr.bf16.mxu0 0
      %798 = vmatmul.mubr.bf16.gmra.mxu0 %v714
      %v799 = vpop.f32.mrf.mxu0
      %v800 = vadd.f32 0.0, %v799
      %v801 = vpop.f32.mrf.mxu0
      %v802 = vpop.f32.mrf.mxu0
      %v803 = vadd.f32 0.0, %v802
      %v804 = vpop.f32.mrf.mxu0
      %805 = vmatprep.mubr.bf16.mxu0 0
      %806 = vmatmul.mubr.bf16.gmra.mxu0 %v717
      %v807 = vpop.f32.mrf.mxu0
      %v808 = vadd.f32 0.0, %v807
      %v809 = vpop.f32.mrf.mxu0
      %v810 = vpop.f32.mrf.mxu0
      %v811 = vadd.f32 0.0, %v810
      %v812 = vpop.f32.mrf.mxu0
      %813 = vmatprep.mubr.bf16.mxu0 0
      %814 = vmatmul.mubr.bf16.gmra.mxu0 %v720
      %v815 = vpop.f32.mrf.mxu0
      %v816 = vadd.f32 0.0, %v815
      %v817 = vpop.f32.mrf.mxu0
      %v818 = vpop.f32.mrf.mxu0
      %v819 = vadd.f32 0.0, %v818
      %v820 = vpop.f32.mrf.mxu0
      %821 = vdwg.mxu0
      %v822 = vadd.f32 %v437, %v760
      %v823 = vadd.f32 %v438, %v763
      %v824 = vadd.f32 %v439, %v768
      %v825 = vadd.f32 %v440, %v771
      %v826 = vadd.f32 %v441, %v776
      %v827 = vadd.f32 %v442, %v779
      %v828 = vadd.f32 %v443, %v784
      %v829 = vadd.f32 %v444, %v787
      %v830 = vadd.f32 %v445, %v792
      %v831 = vadd.f32 %v446, %v795
      %v832 = vadd.f32 %v447, %v800
      %v833 = vadd.f32 %v448, %v803
      %v834 = vadd.f32 %v449, %v808
      %v835 = vadd.f32 %v450, %v811
      %v836 = vadd.f32 %v451, %v816
      %v837 = vadd.f32 %v452, %v819
      %v838 = vld [vmem:[%s253] sm:$0xe]
      %v839 = vld [vmem:[%s253 + $0xc] sm:$0xe]
      %v840 = vld [vmem:[%s253 + $0x18] sm:$0xe]
      %v841 = vld [vmem:[%s253 + $0x24] sm:$0xe]
      %v842 = vld [vmem:[%s253 + $0x30] sm:$0xe]
      %v843 = vld [vmem:[%s253 + $0x3c] sm:$0xe]
      %v844 = vld [vmem:[%s253 + $0x48] sm:$0xe]
      %v845 = vld [vmem:[%s253 + $0x54] sm:$0xe]
      %vm870 = vcmask 1042432
      %vm871 = vcmask 1046532
      %vm872 = vmor %vm870, %vm871
      %v873 = vrot.slane %v838, 5
      %v874 = vrot.slane %v873, 4
      %v875 = vrot.slane %v454, 5
      %v876 = vsel %vm872, %v874, %v875
      %v877 = vrot.slane %v875, 4
      %v878 = vrot.slane %v455, 5
      %v879 = vsel %vm872, %v877, %v878
      %v880 = vrot.slane %v839, 5
      %v881 = vrot.slane %v880, 4
      %v882 = vrot.slane %v457, 5
      %v883 = vsel %vm872, %v881, %v882
      %v884 = vrot.slane %v882, 4
      %v885 = vrot.slane %v458, 5
      %v886 = vsel %vm872, %v884, %v885
      %v887 = vrot.slane %v840, 5
      %v888 = vrot.slane %v887, 4
      %v889 = vrot.slane %v460, 5
      %v890 = vsel %vm872, %v888, %v889
      %v891 = vrot.slane %v889, 4
      %v892 = vrot.slane %v461, 5
      %v893 = vsel %vm872, %v891, %v892
      %v894 = vrot.slane %v841, 5
      %v895 = vrot.slane %v894, 4
      %v896 = vrot.slane %v463, 5
      %v897 = vsel %vm872, %v895, %v896
      %v898 = vrot.slane %v896, 4
      %v899 = vrot.slane %v464, 5
      %v900 = vsel %vm872, %v898, %v899
      %v901 = vrot.slane %v842, 5
      %v902 = vrot.slane %v901, 4
      %v903 = vrot.slane %v466, 5
      %v904 = vsel %vm872, %v902, %v903
      %v905 = vrot.slane %v903, 4
      %v906 = vrot.slane %v467, 5
      %v907 = vsel %vm872, %v905, %v906
      %v908 = vrot.slane %v843, 5
      %v909 = vrot.slane %v908, 4
      %v910 = vrot.slane %v469, 5
      %v911 = vsel %vm872, %v909, %v910
      %v912 = vrot.slane %v910, 4
      %v913 = vrot.slane %v470, 5
      %v914 = vsel %vm872, %v912, %v913
      %v915 = vrot.slane %v844, 5
      %v916 = vrot.slane %v915, 4
      %v917 = vrot.slane %v472, 5
      %v918 = vsel %vm872, %v916, %v917
      %v919 = vrot.slane %v917, 4
      %v920 = vrot.slane %v473, 5
      %v921 = vsel %vm872, %v919, %v920
      %v922 = vrot.slane %v845, 5
      %v923 = vrot.slane %v922, 4
      %v924 = vrot.slane %v475, 5
      %v925 = vsel %vm872, %v923, %v924
      %v926 = vrot.slane %v924, 4
      %v927 = vrot.slane %v476, 5
      %v928 = vsel %vm872, %v926, %v927
      %s929 = scalar_lea.vmem %s224, 4
      %v930 = vld [vmem:[%s929] sm:$0x3]
      %v931 = vunpack.c.l.b16 %v876
      %v932 = vunpack.c.l.b16 %v879
      %v933 = vunpack.c.l.b16 %v883
      %v934 = vunpack.c.l.b16 %v886
      %v935 = vunpack.c.l.b16 %v890
      %v936 = vunpack.c.l.b16 %v893
      %v937 = vunpack.c.l.b16 %v897
      %v938 = vunpack.c.l.b16 %v900
      %v939 = vunpack.c.l.b16 %v904
      %v940 = vunpack.c.l.b16 %v907
      %v941 = vunpack.c.l.b16 %v911
      %v942 = vunpack.c.l.b16 %v914
      %v943 = vunpack.c.l.b16 %v918
      %v944 = vunpack.c.l.b16 %v921
      %v945 = vunpack.c.l.b16 %v925
      %v946 = vunpack.c.l.b16 %v928
      %v947 = vpack.c.b16 %v932, %v931
      %v948 = vpack.c.b16 %v934, %v933
      %v949 = vpack.c.b16 %v936, %v935
      %v950 = vpack.c.b16 %v938, %v937
      %v951 = vpack.c.b16 %v940, %v939
      %v952 = vpack.c.b16 %v942, %v941
      %v953 = vpack.c.b16 %v944, %v943
      %v954 = vpack.c.b16 %v946, %v945
      %v956 = vsel %vm311, %v947, 0
      %v959 = vsel %vm311, %v948, 0
      %v962 = vsel %vm311, %v949, 0
      %v965 = vsel %vm311, %v950, 0
      %v968 = vsel %vm311, %v951, 0
      %v971 = vsel %vm311, %v952, 0
      %v974 = vsel %vm311, %v953, 0
      %v977 = vsel %vm311, %v954, 0
      %v980 = vsel %vm336, %v930, 0
      %982 = vmatprep.subr.bf16.mxu0 0
      %983 = vmatpush1.bf16.msra.mxu0 0
      %984 = vmatprep.subr.bf16.mxu0 0
      %985 = vmatpush1.bf16.msra.mxu0 0
      %986 = vmatprep.subr.bf16.mxu0 0
      %987 = vmatpush1.bf16.msra.mxu0 0
      %988 = vmatprep.subr.bf16.mxu0 0
      %989 = vmatpush1.bf16.msra.mxu0 0
      %990 = vmatprep.subr.bf16.mxu0 0
      %991 = vmatpush1.bf16.msra.mxu0 0
      %992 = vmatprep.subr.bf16.mxu0 0
      %993 = vmatpush1.bf16.msra.mxu0 0
      %994 = vmatprep.subr.bf16.mxu0 0
      %995 = vmatpush1.bf16.msra.mxu0 0
      %996 = vmatprep.subr.bf16.mxu0 0
      %997 = vmatpush1.bf16.msra.mxu0 %v980
      %998 = vmatprep.subr.bf16.mxu0 0
      %999 = vmatpush2.bf16.msra.mxu0 0
      %1000 = vmatprep.subr.bf16.mxu0 0
      %1001 = vmatpush2.bf16.msra.mxu0 0
      %1002 = vmatprep.subr.bf16.mxu0 0
      %1003 = vmatpush2.bf16.msra.mxu0 0
      %1004 = vmatprep.subr.bf16.mxu0 0
      %1005 = vmatpush2.bf16.msra.mxu0 0
      %1006 = vmatprep.subr.bf16.mxu0 0
      %1007 = vmatpush2.bf16.msra.mxu0 0
      %1008 = vmatprep.subr.bf16.mxu0 0
      %1009 = vmatpush2.bf16.msra.mxu0 0
      %1010 = vmatprep.subr.bf16.mxu0 0
      %1011 = vmatpush2.bf16.msra.mxu0 0
      %1012 = vmatprep.subr.bf16.mxu0 0
      %1013 = vmatpush2.bf16.msra.mxu0 0
      %1014 = vmatprep.mubr.bf16.mxu0 0
      %1015 = vmatmul.mubr.bf16.gmra.mxu0 %v956
      %v1016 = vpop.f32.mrf.mxu0
      %v1017 = vadd.f32 0.0, %v1016
      %v1018 = vpop.f32.mrf.mxu0
      %v1019 = vpop.f32.mrf.mxu0
      %v1020 = vadd.f32 0.0, %v1019
      %v1021 = vpop.f32.mrf.mxu0
      %1022 = vmatprep.mubr.bf16.mxu0 0
      %1023 = vmatmul.mubr.bf16.gmra.mxu0 %v959
      %v1024 = vpop.f32.mrf.mxu0
      %v1025 = vadd.f32 0.0, %v1024
      %v1026 = vpop.f32.mrf.mxu0
      %v1027 = vpop.f32.mrf.mxu0
      %v1028 = vadd.f32 0.0, %v1027
      %v1029 = vpop.f32.mrf.mxu0
      %1030 = vmatprep.mubr.bf16.mxu0 0
      %1031 = vmatmul.mubr.bf16.gmra.mxu0 %v962
      %v1032 = vpop.f32.mrf.mxu0
      %v1033 = vadd.f32 0.0, %v1032
      %v1034 = vpop.f32.mrf.mxu0
      %v1035 = vpop.f32.mrf.mxu0
      %v1036 = vadd.f32 0.0, %v1035
      %v1037 = vpop.f32.mrf.mxu0
      %1038 = vmatprep.mubr.bf16.mxu0 0
      %1039 = vmatmul.mubr.bf16.gmra.mxu0 %v965
      %v1040 = vpop.f32.mrf.mxu0
      %v1041 = vadd.f32 0.0, %v1040
      %v1042 = vpop.f32.mrf.mxu0
      %v1043 = vpop.f32.mrf.mxu0
      %v1044 = vadd.f32 0.0, %v1043
      %v1045 = vpop.f32.mrf.mxu0
      %1046 = vmatprep.mubr.bf16.mxu0 0
      %1047 = vmatmul.mubr.bf16.gmra.mxu0 %v968
      %v1048 = vpop.f32.mrf.mxu0
      %v1049 = vadd.f32 0.0, %v1048
      %v1050 = vpop.f32.mrf.mxu0
      %v1051 = vpop.f32.mrf.mxu0
      %v1052 = vadd.f32 0.0, %v1051
      %v1053 = vpop.f32.mrf.mxu0
      %1054 = vmatprep.mubr.bf16.mxu0 0
      %1055 = vmatmul.mubr.bf16.gmra.mxu0 %v971
      %v1056 = vpop.f32.mrf.mxu0
      %v1057 = vadd.f32 0.0, %v1056
      %v1058 = vpop.f32.mrf.mxu0
      %v1059 = vpop.f32.mrf.mxu0
      %v1060 = vadd.f32 0.0, %v1059
      %v1061 = vpop.f32.mrf.mxu0
      %1062 = vmatprep.mubr.bf16.mxu0 0
      %1063 = vmatmul.mubr.bf16.gmra.mxu0 %v974
      %v1064 = vpop.f32.mrf.mxu0
      %v1065 = vadd.f32 0.0, %v1064
      %v1066 = vpop.f32.mrf.mxu0
      %v1067 = vpop.f32.mrf.mxu0
      %v1068 = vadd.f32 0.0, %v1067
      %v1069 = vpop.f32.mrf.mxu0
      %1070 = vmatprep.mubr.bf16.mxu0 0
      %1071 = vmatmul.mubr.bf16.gmra.mxu0 %v977
      %v1072 = vpop.f32.mrf.mxu0
      %v1073 = vadd.f32 0.0, %v1072
      %v1074 = vpop.f32.mrf.mxu0
      %v1075 = vpop.f32.mrf.mxu0
      %v1076 = vadd.f32 0.0, %v1075
      %v1077 = vpop.f32.mrf.mxu0
      %1078 = vdwg.mxu0
      %v1079 = vadd.f32 %v822, %v1017
      %v1080 = vadd.f32 %v823, %v1020
      %v1081 = vadd.f32 %v824, %v1025
      %v1082 = vadd.f32 %v825, %v1028
      %v1083 = vadd.f32 %v826, %v1033
      %v1084 = vadd.f32 %v827, %v1036
      %v1085 = vadd.f32 %v828, %v1041
      %v1086 = vadd.f32 %v829, %v1044
      %v1087 = vadd.f32 %v830, %v1049
      %v1088 = vadd.f32 %v831, %v1052
      %v1089 = vadd.f32 %v832, %v1057
      %v1090 = vadd.f32 %v833, %v1060
      %v1091 = vadd.f32 %v834, %v1065
      %v1092 = vadd.f32 %v835, %v1068
      %v1093 = vadd.f32 %v836, %v1073
      %v1094 = vadd.f32 %v837, %v1076
      %s1095 = sadd.s32 %s243, 1
      %s1096 = smul.u32 %s1095, 3
      %s1097 = smul.addr %s1096, 4
      %s1098 = scalar_lea.vmem %s220, %s1097
      %v1099 = vld [vmem:[%s1098] sm:$0xf]
      %v1100 = vld [vmem:[%s1098 + $0x4] sm:$0xf]
      %v1101 = vld [vmem:[%s1098 + $0xc] sm:$0xf]
      %v1102 = vld [vmem:[%s1098 + $0x10] sm:$0xf]
      %v1103 = vld [vmem:[%s1098 + $0x18] sm:$0xf]
      %v1104 = vld [vmem:[%s1098 + $0x1c] sm:$0xf]
      %v1105 = vld [vmem:[%s1098 + $0x24] sm:$0xf]
      %v1106 = vld [vmem:[%s1098 + $0x28] sm:$0xf]
      %v1107 = vld [vmem:[%s1098 + $0x30] sm:$0xf]
      %v1108 = vld [vmem:[%s1098 + $0x34] sm:$0xf]
      %v1109 = vld [vmem:[%s1098 + $0x3c] sm:$0xf]
      %v1110 = vld [vmem:[%s1098 + $0x40] sm:$0xf]
      %v1111 = vld [vmem:[%s1098 + $0x48] sm:$0xf]
      %v1112 = vld [vmem:[%s1098 + $0x4c] sm:$0xf]
      %v1113 = vld [vmem:[%s1098 + $0x54] sm:$0xf]
      %v1114 = vld [vmem:[%s1098 + $0x58] sm:$0xf]
      %s1115 = scalar_lea.vmem %s224, 6
      %v1116 = vld [vmem:[%s1115] sm:$0x3]
      %v1133 = vunpack.c.l.b16 %v1099
      %v1134 = vunpack.c.l.b16 %v1100
      %v1135 = vunpack.c.l.b16 %v1101
      %v1136 = vunpack.c.l.b16 %v1102
      %v1137 = vunpack.c.l.b16 %v1103
      %v1138 = vunpack.c.l.b16 %v1104
      %v1139 = vunpack.c.l.b16 %v1105
      %v1140 = vunpack.c.l.b16 %v1106
      %v1141 = vunpack.c.l.b16 %v1107
      %v1142 = vunpack.c.l.b16 %v1108
      %v1143 = vunpack.c.l.b16 %v1109
      %v1144 = vunpack.c.l.b16 %v1110
      %v1145 = vunpack.c.l.b16 %v1111
      %v1146 = vunpack.c.l.b16 %v1112
      %v1147 = vunpack.c.l.b16 %v1113
      %v1148 = vunpack.c.l.b16 %v1114
      %v1149 = vpack.c.b16 %v1134, %v1133
      %v1150 = vpack.c.b16 %v1136, %v1135
      %v1151 = vpack.c.b16 %v1138, %v1137
      %v1152 = vpack.c.b16 %v1140, %v1139
      %v1153 = vpack.c.b16 %v1142, %v1141
      %v1154 = vpack.c.b16 %v1144, %v1143
      %v1155 = vpack.c.b16 %v1146, %v1145
      %v1156 = vpack.c.b16 %v1148, %v1147
      %v1158 = vsel %vm311, %v1149, 0
      %v1161 = vsel %vm311, %v1150, 0
      %v1164 = vsel %vm311, %v1151, 0
      %v1167 = vsel %vm311, %v1152, 0
      %v1170 = vsel %vm311, %v1153, 0
      %v1173 = vsel %vm311, %v1154, 0
      %v1176 = vsel %vm311, %v1155, 0
      %v1179 = vsel %vm311, %v1156, 0
      %v1182 = vsel %vm336, %v1116, 0
      %1184 = vmatprep.subr.bf16.mxu0 0
      %1185 = vmatpush1.bf16.msra.mxu0 0
      %1186 = vmatprep.subr.bf16.mxu0 0
      %1187 = vmatpush1.bf16.msra.mxu0 0
      %1188 = vmatprep.subr.bf16.mxu0 0
      %1189 = vmatpush1.bf16.msra.mxu0 0
      %1190 = vmatprep.subr.bf16.mxu0 0
      %1191 = vmatpush1.bf16.msra.mxu0 0
      %1192 = vmatprep.subr.bf16.mxu0 0
      %1193 = vmatpush1.bf16.msra.mxu0 0
      %1194 = vmatprep.subr.bf16.mxu0 0
      %1195 = vmatpush1.bf16.msra.mxu0 0
      %1196 = vmatprep.subr.bf16.mxu0 0
      %1197 = vmatpush1.bf16.msra.mxu0 0
      %1198 = vmatprep.subr.bf16.mxu0 0
      %1199 = vmatpush1.bf16.msra.mxu0 %v1182
      %1200 = vmatprep.subr.bf16.mxu0 0
      %1201 = vmatpush2.bf16.msra.mxu0 0
      %1202 = vmatprep.subr.bf16.mxu0 0
      %1203 = vmatpush2.bf16.msra.mxu0 0
      %1204 = vmatprep.subr.bf16.mxu0 0
      %1205 = vmatpush2.bf16.msra.mxu0 0
      %1206 = vmatprep.subr.bf16.mxu0 0
      %1207 = vmatpush2.bf16.msra.mxu0 0
      %1208 = vmatprep.subr.bf16.mxu0 0
      %1209 = vmatpush2.bf16.msra.mxu0 0
      %1210 = vmatprep.subr.bf16.mxu0 0
      %1211 = vmatpush2.bf16.msra.mxu0 0
      %1212 = vmatprep.subr.bf16.mxu0 0
      %1213 = vmatpush2.bf16.msra.mxu0 0
      %1214 = vmatprep.subr.bf16.mxu0 0
      %1215 = vmatpush2.bf16.msra.mxu0 0
      %1216 = vmatprep.mubr.bf16.mxu0 0
      %1217 = vmatmul.mubr.bf16.gmra.mxu0 %v1158
      %v1218 = vpop.f32.mrf.mxu0
      %v1219 = vadd.f32 0.0, %v1218
      %v1220 = vpop.f32.mrf.mxu0
      %v1221 = vpop.f32.mrf.mxu0
      %v1222 = vadd.f32 0.0, %v1221
      %v1223 = vpop.f32.mrf.mxu0
      %1224 = vmatprep.mubr.bf16.mxu0 0
      %1225 = vmatmul.mubr.bf16.gmra.mxu0 %v1161
      %v1226 = vpop.f32.mrf.mxu0
      %v1227 = vadd.f32 0.0, %v1226
      %v1228 = vpop.f32.mrf.mxu0
      %v1229 = vpop.f32.mrf.mxu0
      %v1230 = vadd.f32 0.0, %v1229
      %v1231 = vpop.f32.mrf.mxu0
      %1232 = vmatprep.mubr.bf16.mxu0 0
      %1233 = vmatmul.mubr.bf16.gmra.mxu0 %v1164
      %v1234 = vpop.f32.mrf.mxu0
      %v1235 = vadd.f32 0.0, %v1234
      %v1236 = vpop.f32.mrf.mxu0
      %v1237 = vpop.f32.mrf.mxu0
      %v1238 = vadd.f32 0.0, %v1237
      %v1239 = vpop.f32.mrf.mxu0
      %1240 = vmatprep.mubr.bf16.mxu0 0
      %1241 = vmatmul.mubr.bf16.gmra.mxu0 %v1167
      %v1242 = vpop.f32.mrf.mxu0
      %v1243 = vadd.f32 0.0, %v1242
      %v1244 = vpop.f32.mrf.mxu0
      %v1245 = vpop.f32.mrf.mxu0
      %v1246 = vadd.f32 0.0, %v1245
      %v1247 = vpop.f32.mrf.mxu0
      %1248 = vmatprep.mubr.bf16.mxu0 0
      %1249 = vmatmul.mubr.bf16.gmra.mxu0 %v1170
      %v1250 = vpop.f32.mrf.mxu0
      %v1251 = vadd.f32 0.0, %v1250
      %v1252 = vpop.f32.mrf.mxu0
      %v1253 = vpop.f32.mrf.mxu0
      %v1254 = vadd.f32 0.0, %v1253
      %v1255 = vpop.f32.mrf.mxu0
      %1256 = vmatprep.mubr.bf16.mxu0 0
      %1257 = vmatmul.mubr.bf16.gmra.mxu0 %v1173
      %v1258 = vpop.f32.mrf.mxu0
      %v1259 = vadd.f32 0.0, %v1258
      %v1260 = vpop.f32.mrf.mxu0
      %v1261 = vpop.f32.mrf.mxu0
      %v1262 = vadd.f32 0.0, %v1261
      %v1263 = vpop.f32.mrf.mxu0
      %1264 = vmatprep.mubr.bf16.mxu0 0
      %1265 = vmatmul.mubr.bf16.gmra.mxu0 %v1176
      %v1266 = vpop.f32.mrf.mxu0
      %v1267 = vadd.f32 0.0, %v1266
      %v1268 = vpop.f32.mrf.mxu0
      %v1269 = vpop.f32.mrf.mxu0
      %v1270 = vadd.f32 0.0, %v1269
      %v1271 = vpop.f32.mrf.mxu0
      %1272 = vmatprep.mubr.bf16.mxu0 0
      %1273 = vmatmul.mubr.bf16.gmra.mxu0 %v1179
      %v1274 = vpop.f32.mrf.mxu0
      %v1275 = vadd.f32 0.0, %v1274
      %v1276 = vpop.f32.mrf.mxu0
      %v1277 = vpop.f32.mrf.mxu0
      %v1278 = vadd.f32 0.0, %v1277
      %v1279 = vpop.f32.mrf.mxu0
      %1280 = vdwg.mxu0
      %v1281 = vadd.f32 %v1079, %v1219
      %v1282 = vadd.f32 %v1080, %v1222
      %v1283 = vadd.f32 %v1081, %v1227
      %v1284 = vadd.f32 %v1082, %v1230
      %v1285 = vadd.f32 %v1083, %v1235
      %v1286 = vadd.f32 %v1084, %v1238
      %v1287 = vadd.f32 %v1085, %v1243
      %v1288 = vadd.f32 %v1086, %v1246
      %v1289 = vadd.f32 %v1087, %v1251
      %v1290 = vadd.f32 %v1088, %v1254
      %v1291 = vadd.f32 %v1089, %v1259
      %v1292 = vadd.f32 %v1090, %v1262
      %v1293 = vadd.f32 %v1091, %v1267
      %v1294 = vadd.f32 %v1092, %v1270
      %v1295 = vadd.f32 %v1093, %v1275
      %v1296 = vadd.f32 %v1094, %v1278
      %v1297 = vld [vmem:[%s1098] sm:$0xf]
      %v1298 = vld [vmem:[%s1098 + $0x4] sm:$0xf]
      %v1299 = vld [vmem:[%s1098 + $0x8] sm:$0x1]
      %v1300 = vld [vmem:[%s1098 + $0xc] sm:$0xf]
      %v1301 = vld [vmem:[%s1098 + $0x10] sm:$0xf]
      %v1302 = vld [vmem:[%s1098 + $0x14] sm:$0x1]
      %v1303 = vld [vmem:[%s1098 + $0x18] sm:$0xf]
      %v1304 = vld [vmem:[%s1098 + $0x1c] sm:$0xf]
      %v1305 = vld [vmem:[%s1098 + $0x20] sm:$0x1]
      %v1306 = vld [vmem:[%s1098 + $0x24] sm:$0xf]
      %v1307 = vld [vmem:[%s1098 + $0x28] sm:$0xf]
      %v1308 = vld [vmem:[%s1098 + $0x2c] sm:$0x1]
      %v1309 = vld [vmem:[%s1098 + $0x30] sm:$0xf]
      %v1310 = vld [vmem:[%s1098 + $0x34] sm:$0xf]
      %v1311 = vld [vmem:[%s1098 + $0x38] sm:$0x1]
      %v1312 = vld [vmem:[%s1098 + $0x3c] sm:$0xf]
      %v1313 = vld [vmem:[%s1098 + $0x40] sm:$0xf]
      %v1314 = vld [vmem:[%s1098 + $0x44] sm:$0x1]
      %v1315 = vld [vmem:[%s1098 + $0x48] sm:$0xf]
      %v1316 = vld [vmem:[%s1098 + $0x4c] sm:$0xf]
      %v1317 = vld [vmem:[%s1098 + $0x50] sm:$0x1]
      %v1318 = vld [vmem:[%s1098 + $0x54] sm:$0xf]
      %v1319 = vld [vmem:[%s1098 + $0x58] sm:$0xf]
      %v1320 = vld [vmem:[%s1098 + $0x5c] sm:$0x1]
      %v1322 = vshrl.u32 %v1297, 16
      %v1324 = vrot.slane %v1322, 4
      %v1325 = vshll.u32 %v1297, 16
      %v1327 = vrot.slane %v1325, 5
      %v1328 = vor.u32 %v1324, %v1327
      %v1329 = vrot.slane %v1328, 4
      %v1331 = vshll.u32 %v1298, 16
      %v1333 = vrot.slane %v1331, 5
      %v1334 = vsel %vm479, %v1329, %v1333
      %v1335 = vshrl.u32 %v1298, 16
      %v1337 = vrot.slane %v1335, 4
      %v1338 = vor.u32 %v1337, %v1333
      %v1339 = vrot.slane %v1338, 4
      %v1341 = vshll.u32 %v1299, 16
      %v1343 = vrot.slane %v1341, 5
      %v1344 = vsel %vm479, %v1339, %v1343
      %v1346 = vshrl.u32 %v1300, 16
      %v1348 = vrot.slane %v1346, 4
      %v1349 = vshll.u32 %v1300, 16
      %v1351 = vrot.slane %v1349, 5
      %v1352 = vor.u32 %v1348, %v1351
      %v1353 = vrot.slane %v1352, 4
      %v1355 = vshll.u32 %v1301, 16
      %v1357 = vrot.slane %v1355, 5
      %v1358 = vsel %vm479, %v1353, %v1357
      %v1359 = vshrl.u32 %v1301, 16
      %v1361 = vrot.slane %v1359, 4
      %v1362 = vor.u32 %v1361, %v1357
      %v1363 = vrot.slane %v1362, 4
      %v1365 = vshll.u32 %v1302, 16
      %v1367 = vrot.slane %v1365, 5
      %v1368 = vsel %vm479, %v1363, %v1367
      %v1370 = vshrl.u32 %v1303, 16
      %v1372 = vrot.slane %v1370, 4
      %v1373 = vshll.u32 %v1303, 16
      %v1375 = vrot.slane %v1373, 5
      %v1376 = vor.u32 %v1372, %v1375
      %v1377 = vrot.slane %v1376, 4
      %v1379 = vshll.u32 %v1304, 16
      %v1381 = vrot.slane %v1379, 5
      %v1382 = vsel %vm479, %v1377, %v1381
      %v1383 = vshrl.u32 %v1304, 16
      %v1385 = vrot.slane %v1383, 4
      %v1386 = vor.u32 %v1385, %v1381
      %v1387 = vrot.slane %v1386, 4
      %v1389 = vshll.u32 %v1305, 16
      %v1391 = vrot.slane %v1389, 5
      %v1392 = vsel %vm479, %v1387, %v1391
      %v1394 = vshrl.u32 %v1306, 16
      %v1396 = vrot.slane %v1394, 4
      %v1397 = vshll.u32 %v1306, 16
      %v1399 = vrot.slane %v1397, 5
      %v1400 = vor.u32 %v1396, %v1399
      %v1401 = vrot.slane %v1400, 4
      %v1403 = vshll.u32 %v1307, 16
      %v1405 = vrot.slane %v1403, 5
      %v1406 = vsel %vm479, %v1401, %v1405
      %v1407 = vshrl.u32 %v1307, 16
      %v1409 = vrot.slane %v1407, 4
      %v1410 = vor.u32 %v1409, %v1405
      %v1411 = vrot.slane %v1410, 4
      %v1413 = vshll.u32 %v1308, 16
      %v1415 = vrot.slane %v1413, 5
      %v1416 = vsel %vm479, %v1411, %v1415
      %v1418 = vshrl.u32 %v1309, 16
      %v1420 = vrot.slane %v1418, 4
      %v1421 = vshll.u32 %v1309, 16
      %v1423 = vrot.slane %v1421, 5
      %v1424 = vor.u32 %v1420, %v1423
      %v1425 = vrot.slane %v1424, 4
      %v1427 = vshll.u32 %v1310, 16
      %v1429 = vrot.slane %v1427, 5
      %v1430 = vsel %vm479, %v1425, %v1429
      %v1431 = vshrl.u32 %v1310, 16
      %v1433 = vrot.slane %v1431, 4
      %v1434 = vor.u32 %v1433, %v1429
      %v1435 = vrot.slane %v1434, 4
      %v1437 = vshll.u32 %v1311, 16
      %v1439 = vrot.slane %v1437, 5
      %v1440 = vsel %vm479, %v1435, %v1439
      %v1442 = vshrl.u32 %v1312, 16
      %v1444 = vrot.slane %v1442, 4
      %v1445 = vshll.u32 %v1312, 16
      %v1447 = vrot.slane %v1445, 5
      %v1448 = vor.u32 %v1444, %v1447
      %v1449 = vrot.slane %v1448, 4
      %v1451 = vshll.u32 %v1313, 16
      %v1453 = vrot.slane %v1451, 5
      %v1454 = vsel %vm479, %v1449, %v1453
      %v1455 = vshrl.u32 %v1313, 16
      %v1457 = vrot.slane %v1455, 4
      %v1458 = vor.u32 %v1457, %v1453
      %v1459 = vrot.slane %v1458, 4
      %v1461 = vshll.u32 %v1314, 16
      %v1463 = vrot.slane %v1461, 5
      %v1464 = vsel %vm479, %v1459, %v1463
      %v1466 = vshrl.u32 %v1315, 16
      %v1468 = vrot.slane %v1466, 4
      %v1469 = vshll.u32 %v1315, 16
      %v1471 = vrot.slane %v1469, 5
      %v1472 = vor.u32 %v1468, %v1471
      %v1473 = vrot.slane %v1472, 4
      %v1475 = vshll.u32 %v1316, 16
      %v1477 = vrot.slane %v1475, 5
      %v1478 = vsel %vm479, %v1473, %v1477
      %v1479 = vshrl.u32 %v1316, 16
      %v1481 = vrot.slane %v1479, 4
      %v1482 = vor.u32 %v1481, %v1477
      %v1483 = vrot.slane %v1482, 4
      %v1485 = vshll.u32 %v1317, 16
      %v1487 = vrot.slane %v1485, 5
      %v1488 = vsel %vm479, %v1483, %v1487
      %v1490 = vshrl.u32 %v1318, 16
      %v1492 = vrot.slane %v1490, 4
      %v1493 = vshll.u32 %v1318, 16
      %v1495 = vrot.slane %v1493, 5
      %v1496 = vor.u32 %v1492, %v1495
      %v1497 = vrot.slane %v1496, 4
      %v1499 = vshll.u32 %v1319, 16
      %v1501 = vrot.slane %v1499, 5
      %v1502 = vsel %vm479, %v1497, %v1501
      %v1503 = vshrl.u32 %v1319, 16
      %v1505 = vrot.slane %v1503, 4
      %v1506 = vor.u32 %v1505, %v1501
      %v1507 = vrot.slane %v1506, 4
      %v1509 = vshll.u32 %v1320, 16
      %v1511 = vrot.slane %v1509, 5
      %v1512 = vsel %vm479, %v1507, %v1511
      %s1513 = scalar_lea.vmem %s224, 8
      %v1514 = vld [vmem:[%s1513] sm:$0x3]
      %v1515 = vunpack.c.l.b16 %v1334
      %v1516 = vunpack.c.l.b16 %v1344
      %v1517 = vunpack.c.l.b16 %v1358
      %v1518 = vunpack.c.l.b16 %v1368
      %v1519 = vunpack.c.l.b16 %v1382
      %v1520 = vunpack.c.l.b16 %v1392
      %v1521 = vunpack.c.l.b16 %v1406
      %v1522 = vunpack.c.l.b16 %v1416
      %v1523 = vunpack.c.l.b16 %v1430
      %v1524 = vunpack.c.l.b16 %v1440
      %v1525 = vunpack.c.l.b16 %v1454
      %v1526 = vunpack.c.l.b16 %v1464
      %v1527 = vunpack.c.l.b16 %v1478
      %v1528 = vunpack.c.l.b16 %v1488
      %v1529 = vunpack.c.l.b16 %v1502
      %v1530 = vunpack.c.l.b16 %v1512
      %v1531 = vpack.c.b16 %v1516, %v1515
      %v1532 = vpack.c.b16 %v1518, %v1517
      %v1533 = vpack.c.b16 %v1520, %v1519
      %v1534 = vpack.c.b16 %v1522, %v1521
      %v1535 = vpack.c.b16 %v1524, %v1523
      %v1536 = vpack.c.b16 %v1526, %v1525
      %v1537 = vpack.c.b16 %v1528, %v1527
      %v1538 = vpack.c.b16 %v1530, %v1529
      %v1540 = vsel %vm311, %v1531, 0
      %v1543 = vsel %vm311, %v1532, 0
      %v1546 = vsel %vm311, %v1533, 0
      %v1549 = vsel %vm311, %v1534, 0
      %v1552 = vsel %vm311, %v1535, 0
      %v1555 = vsel %vm311, %v1536, 0
      %v1558 = vsel %vm311, %v1537, 0
      %v1561 = vsel %vm311, %v1538, 0
      %v1564 = vsel %vm336, %v1514, 0
      %1566 = vmatprep.subr.bf16.mxu0 0
      %1567 = vmatpush1.bf16.msra.mxu0 0
      %1568 = vmatprep.subr.bf16.mxu0 0
      %1569 = vmatpush1.bf16.msra.mxu0 0
      %1570 = vmatprep.subr.bf16.mxu0 0
      %1571 = vmatpush1.bf16.msra.mxu0 0
      %1572 = vmatprep.subr.bf16.mxu0 0
      %1573 = vmatpush1.bf16.msra.mxu0 0
      %1574 = vmatprep.subr.bf16.mxu0 0
      %1575 = vmatpush1.bf16.msra.mxu0 0
      %1576 = vmatprep.subr.bf16.mxu0 0
      %1577 = vmatpush1.bf16.msra.mxu0 0
      %1578 = vmatprep.subr.bf16.mxu0 0
      %1579 = vmatpush1.bf16.msra.mxu0 0
      %1580 = vmatprep.subr.bf16.mxu0 0
      %1581 = vmatpush1.bf16.msra.mxu0 %v1564
      %1582 = vmatprep.subr.bf16.mxu0 0
      %1583 = vmatpush2.bf16.msra.mxu0 0
      %1584 = vmatprep.subr.bf16.mxu0 0
      %1585 = vmatpush2.bf16.msra.mxu0 0
      %1586 = vmatprep.subr.bf16.mxu0 0
      %1587 = vmatpush2.bf16.msra.mxu0 0
      %1588 = vmatprep.subr.bf16.mxu0 0
      %1589 = vmatpush2.bf16.msra.mxu0 0
      %1590 = vmatprep.subr.bf16.mxu0 0
      %1591 = vmatpush2.bf16.msra.mxu0 0
      %1592 = vmatprep.subr.bf16.mxu0 0
      %1593 = vmatpush2.bf16.msra.mxu0 0
      %1594 = vmatprep.subr.bf16.mxu0 0
      %1595 = vmatpush2.bf16.msra.mxu0 0
      %1596 = vmatprep.subr.bf16.mxu0 0
      %1597 = vmatpush2.bf16.msra.mxu0 0
      %1598 = vmatprep.mubr.bf16.mxu0 0
      %1599 = vmatmul.mubr.bf16.gmra.mxu0 %v1540
      %v1600 = vpop.f32.mrf.mxu0
      %v1601 = vadd.f32 0.0, %v1600
      %v1602 = vpop.f32.mrf.mxu0
      %v1603 = vpop.f32.mrf.mxu0
      %v1604 = vadd.f32 0.0, %v1603
      %v1605 = vpop.f32.mrf.mxu0
      %1606 = vmatprep.mubr.bf16.mxu0 0
      %1607 = vmatmul.mubr.bf16.gmra.mxu0 %v1543
      %v1608 = vpop.f32.mrf.mxu0
      %v1609 = vadd.f32 0.0, %v1608
      %v1610 = vpop.f32.mrf.mxu0
      %v1611 = vpop.f32.mrf.mxu0
      %v1612 = vadd.f32 0.0, %v1611
      %v1613 = vpop.f32.mrf.mxu0
      %1614 = vmatprep.mubr.bf16.mxu0 0
      %1615 = vmatmul.mubr.bf16.gmra.mxu0 %v1546
      %v1616 = vpop.f32.mrf.mxu0
      %v1617 = vadd.f32 0.0, %v1616
      %v1618 = vpop.f32.mrf.mxu0
      %v1619 = vpop.f32.mrf.mxu0
      %v1620 = vadd.f32 0.0, %v1619
      %v1621 = vpop.f32.mrf.mxu0
      %1622 = vmatprep.mubr.bf16.mxu0 0
      %1623 = vmatmul.mubr.bf16.gmra.mxu0 %v1549
      %v1624 = vpop.f32.mrf.mxu0
      %v1625 = vadd.f32 0.0, %v1624
      %v1626 = vpop.f32.mrf.mxu0
      %v1627 = vpop.f32.mrf.mxu0
      %v1628 = vadd.f32 0.0, %v1627
      %v1629 = vpop.f32.mrf.mxu0
      %1630 = vmatprep.mubr.bf16.mxu0 0
      %1631 = vmatmul.mubr.bf16.gmra.mxu0 %v1552
      %v1632 = vpop.f32.mrf.mxu0
      %v1633 = vadd.f32 0.0, %v1632
      %v1634 = vpop.f32.mrf.mxu0
      %v1635 = vpop.f32.mrf.mxu0
      %v1636 = vadd.f32 0.0, %v1635
      %v1637 = vpop.f32.mrf.mxu0
      %1638 = vmatprep.mubr.bf16.mxu0 0
      %1639 = vmatmul.mubr.bf16.gmra.mxu0 %v1555
      %v1640 = vpop.f32.mrf.mxu0
      %v1641 = vadd.f32 0.0, %v1640
      %v1642 = vpop.f32.mrf.mxu0
      %v1643 = vpop.f32.mrf.mxu0
      %v1644 = vadd.f32 0.0, %v1643
      %v1645 = vpop.f32.mrf.mxu0
      %1646 = vmatprep.mubr.bf16.mxu0 0
      %1647 = vmatmul.mubr.bf16.gmra.mxu0 %v1558
      %v1648 = vpop.f32.mrf.mxu0
      %v1649 = vadd.f32 0.0, %v1648
      %v1650 = vpop.f32.mrf.mxu0
      %v1651 = vpop.f32.mrf.mxu0
      %v1652 = vadd.f32 0.0, %v1651
      %v1653 = vpop.f32.mrf.mxu0
      %1654 = vmatprep.mubr.bf16.mxu0 0
      %1655 = vmatmul.mubr.bf16.gmra.mxu0 %v1561
      %v1656 = vpop.f32.mrf.mxu0
      %v1657 = vadd.f32 0.0, %v1656
      %v1658 = vpop.f32.mrf.mxu0
      %v1659 = vpop.f32.mrf.mxu0
      %v1660 = vadd.f32 0.0, %v1659
      %v1661 = vpop.f32.mrf.mxu0
      %1662 = vdwg.mxu0
      %v1663 = vadd.f32 %v1281, %v1601
      %v1664 = vadd.f32 %v1282, %v1604
      %v1665 = vadd.f32 %v1283, %v1609
      %v1666 = vadd.f32 %v1284, %v1612
      %v1667 = vadd.f32 %v1285, %v1617
      %v1668 = vadd.f32 %v1286, %v1620
      %v1669 = vadd.f32 %v1287, %v1625
      %v1670 = vadd.f32 %v1288, %v1628
      %v1671 = vadd.f32 %v1289, %v1633
      %v1672 = vadd.f32 %v1290, %v1636
      %v1673 = vadd.f32 %v1291, %v1641
      %v1674 = vadd.f32 %v1292, %v1644
      %v1675 = vadd.f32 %v1293, %v1649
      %v1676 = vadd.f32 %v1294, %v1652
      %v1677 = vadd.f32 %v1295, %v1657
      %v1678 = vadd.f32 %v1296, %v1660
      %v1679 = vld [vmem:[%s1098] sm:$0xe]
      %v1680 = vld [vmem:[%s1098 + $0xc] sm:$0xe]
      %v1681 = vld [vmem:[%s1098 + $0x18] sm:$0xe]
      %v1682 = vld [vmem:[%s1098 + $0x24] sm:$0xe]
      %v1683 = vld [vmem:[%s1098 + $0x30] sm:$0xe]
      %v1684 = vld [vmem:[%s1098 + $0x3c] sm:$0xe]
      %v1685 = vld [vmem:[%s1098 + $0x48] sm:$0xe]
      %v1686 = vld [vmem:[%s1098 + $0x54] sm:$0xe]
      %v1711 = vrot.slane %v1679, 5
      %v1712 = vrot.slane %v1711, 4
      %v1713 = vrot.slane %v1298, 5
      %v1714 = vsel %vm872, %v1712, %v1713
      %v1715 = vrot.slane %v1713, 4
      %v1716 = vrot.slane %v1299, 5
      %v1717 = vsel %vm872, %v1715, %v1716
      %v1718 = vrot.slane %v1680, 5
      %v1719 = vrot.slane %v1718, 4
      %v1720 = vrot.slane %v1301, 5
      %v1721 = vsel %vm872, %v1719, %v1720
      %v1722 = vrot.slane %v1720, 4
      %v1723 = vrot.slane %v1302, 5
      %v1724 = vsel %vm872, %v1722, %v1723
      %v1725 = vrot.slane %v1681, 5
      %v1726 = vrot.slane %v1725, 4
      %v1727 = vrot.slane %v1304, 5
      %v1728 = vsel %vm872, %v1726, %v1727
      %v1729 = vrot.slane %v1727, 4
      %v1730 = vrot.slane %v1305, 5
      %v1731 = vsel %vm872, %v1729, %v1730
      %v1732 = vrot.slane %v1682, 5
      %v1733 = vrot.slane %v1732, 4
      %v1734 = vrot.slane %v1307, 5
      %v1735 = vsel %vm872, %v1733, %v1734
      %v1736 = vrot.slane %v1734, 4
      %v1737 = vrot.slane %v1308, 5
      %v1738 = vsel %vm872, %v1736, %v1737
      %v1739 = vrot.slane %v1683, 5
      %v1740 = vrot.slane %v1739, 4
      %v1741 = vrot.slane %v1310, 5
      %v1742 = vsel %vm872, %v1740, %v1741
      %v1743 = vrot.slane %v1741, 4
      %v1744 = vrot.slane %v1311, 5
      %v1745 = vsel %vm872, %v1743, %v1744
      %v1746 = vrot.slane %v1684, 5
      %v1747 = vrot.slane %v1746, 4
      %v1748 = vrot.slane %v1313, 5
      %v1749 = vsel %vm872, %v1747, %v1748
      %v1750 = vrot.slane %v1748, 4
      %v1751 = vrot.slane %v1314, 5
      %v1752 = vsel %vm872, %v1750, %v1751
      %v1753 = vrot.slane %v1685, 5
      %v1754 = vrot.slane %v1753, 4
      %v1755 = vrot.slane %v1316, 5
      %v1756 = vsel %vm872, %v1754, %v1755
      %v1757 = vrot.slane %v1755, 4
      %v1758 = vrot.slane %v1317, 5
      %v1759 = vsel %vm872, %v1757, %v1758
      %v1760 = vrot.slane %v1686, 5
      %v1761 = vrot.slane %v1760, 4
      %v1762 = vrot.slane %v1319, 5
      %v1763 = vsel %vm872, %v1761, %v1762
      %v1764 = vrot.slane %v1762, 4
      %v1765 = vrot.slane %v1320, 5
      %v1766 = vsel %vm872, %v1764, %v1765
      %s1767 = scalar_lea.vmem %s224, 10
      %v1768 = vld [vmem:[%s1767] sm:$0x3]
      %v1769 = vunpack.c.l.b16 %v1714
      %v1770 = vunpack.c.l.b16 %v1717
      %v1771 = vunpack.c.l.b16 %v1721
      %v1772 = vunpack.c.l.b16 %v1724
      %v1773 = vunpack.c.l.b16 %v1728
      %v1774 = vunpack.c.l.b16 %v1731
      %v1775 = vunpack.c.l.b16 %v1735
      %v1776 = vunpack.c.l.b16 %v1738
      %v1777 = vunpack.c.l.b16 %v1742
      %v1778 = vunpack.c.l.b16 %v1745
      %v1779 = vunpack.c.l.b16 %v1749
      %v1780 = vunpack.c.l.b16 %v1752
      %v1781 = vunpack.c.l.b16 %v1756
      %v1782 = vunpack.c.l.b16 %v1759
      %v1783 = vunpack.c.l.b16 %v1763
      %v1784 = vunpack.c.l.b16 %v1766
      %v1785 = vpack.c.b16 %v1770, %v1769
      %v1786 = vpack.c.b16 %v1772, %v1771
      %v1787 = vpack.c.b16 %v1774, %v1773
      %v1788 = vpack.c.b16 %v1776, %v1775
      %v1789 = vpack.c.b16 %v1778, %v1777
      %v1790 = vpack.c.b16 %v1780, %v1779
      %v1791 = vpack.c.b16 %v1782, %v1781
      %v1792 = vpack.c.b16 %v1784, %v1783
      %v1794 = vsel %vm311, %v1785, 0
      %v1797 = vsel %vm311, %v1786, 0
      %v1800 = vsel %vm311, %v1787, 0
      %v1803 = vsel %vm311, %v1788, 0
      %v1806 = vsel %vm311, %v1789, 0
      %v1809 = vsel %vm311, %v1790, 0
      %v1812 = vsel %vm311, %v1791, 0
      %v1815 = vsel %vm311, %v1792, 0
      %v1818 = vsel %vm336, %v1768, 0
      %1820 = vmatprep.subr.bf16.mxu0 0
      %1821 = vmatpush1.bf16.msra.mxu0 0
      %1822 = vmatprep.subr.bf16.mxu0 0
      %1823 = vmatpush1.bf16.msra.mxu0 0
      %1824 = vmatprep.subr.bf16.mxu0 0
      %1825 = vmatpush1.bf16.msra.mxu0 0
      %1826 = vmatprep.subr.bf16.mxu0 0
      %1827 = vmatpush1.bf16.msra.mxu0 0
      %1828 = vmatprep.subr.bf16.mxu0 0
      %1829 = vmatpush1.bf16.msra.mxu0 0
      %1830 = vmatprep.subr.bf16.mxu0 0
      %1831 = vmatpush1.bf16.msra.mxu0 0
      %1832 = vmatprep.subr.bf16.mxu0 0
      %1833 = vmatpush1.bf16.msra.mxu0 0
      %1834 = vmatprep.subr.bf16.mxu0 0
      %1835 = vmatpush1.bf16.msra.mxu0 %v1818
      %1836 = vmatprep.subr.bf16.mxu0 0
      %1837 = vmatpush2.bf16.msra.mxu0 0
      %1838 = vmatprep.subr.bf16.mxu0 0
      %1839 = vmatpush2.bf16.msra.mxu0 0
      %1840 = vmatprep.subr.bf16.mxu0 0
      %1841 = vmatpush2.bf16.msra.mxu0 0
      %1842 = vmatprep.subr.bf16.mxu0 0
      %1843 = vmatpush2.bf16.msra.mxu0 0
      %1844 = vmatprep.subr.bf16.mxu0 0
      %1845 = vmatpush2.bf16.msra.mxu0 0
      %1846 = vmatprep.subr.bf16.mxu0 0
      %1847 = vmatpush2.bf16.msra.mxu0 0
      %1848 = vmatprep.subr.bf16.mxu0 0
      %1849 = vmatpush2.bf16.msra.mxu0 0
      %1850 = vmatprep.subr.bf16.mxu0 0
      %1851 = vmatpush2.bf16.msra.mxu0 0
      %1852 = vmatprep.mubr.bf16.mxu0 0
      %1853 = vmatmul.mubr.bf16.gmra.mxu0 %v1794
      %v1854 = vpop.f32.mrf.mxu0
      %v1855 = vadd.f32 0.0, %v1854
      %v1856 = vpop.f32.mrf.mxu0
      %v1857 = vpop.f32.mrf.mxu0
      %v1858 = vadd.f32 0.0, %v1857
      %v1859 = vpop.f32.mrf.mxu0
      %1860 = vmatprep.mubr.bf16.mxu0 0
      %1861 = vmatmul.mubr.bf16.gmra.mxu0 %v1797
      %v1862 = vpop.f32.mrf.mxu0
      %v1863 = vadd.f32 0.0, %v1862
      %v1864 = vpop.f32.mrf.mxu0
      %v1865 = vpop.f32.mrf.mxu0
      %v1866 = vadd.f32 0.0, %v1865
      %v1867 = vpop.f32.mrf.mxu0
      %1868 = vmatprep.mubr.bf16.mxu0 0
      %1869 = vmatmul.mubr.bf16.gmra.mxu0 %v1800
      %v1870 = vpop.f32.mrf.mxu0
      %v1871 = vadd.f32 0.0, %v1870
      %v1872 = vpop.f32.mrf.mxu0
      %v1873 = vpop.f32.mrf.mxu0
      %v1874 = vadd.f32 0.0, %v1873
      %v1875 = vpop.f32.mrf.mxu0
      %1876 = vmatprep.mubr.bf16.mxu0 0
      %1877 = vmatmul.mubr.bf16.gmra.mxu0 %v1803
      %v1878 = vpop.f32.mrf.mxu0
      %v1879 = vadd.f32 0.0, %v1878
      %v1880 = vpop.f32.mrf.mxu0
      %v1881 = vpop.f32.mrf.mxu0
      %v1882 = vadd.f32 0.0, %v1881
      %v1883 = vpop.f32.mrf.mxu0
      %1884 = vmatprep.mubr.bf16.mxu0 0
      %1885 = vmatmul.mubr.bf16.gmra.mxu0 %v1806
      %v1886 = vpop.f32.mrf.mxu0
      %v1887 = vadd.f32 0.0, %v1886
      %v1888 = vpop.f32.mrf.mxu0
      %v1889 = vpop.f32.mrf.mxu0
      %v1890 = vadd.f32 0.0, %v1889
      %v1891 = vpop.f32.mrf.mxu0
      %1892 = vmatprep.mubr.bf16.mxu0 0
      %1893 = vmatmul.mubr.bf16.gmra.mxu0 %v1809
      %v1894 = vpop.f32.mrf.mxu0
      %v1895 = vadd.f32 0.0, %v1894
      %v1896 = vpop.f32.mrf.mxu0
      %v1897 = vpop.f32.mrf.mxu0
      %v1898 = vadd.f32 0.0, %v1897
      %v1899 = vpop.f32.mrf.mxu0
      %1900 = vmatprep.mubr.bf16.mxu0 0
      %1901 = vmatmul.mubr.bf16.gmra.mxu0 %v1812
      %v1902 = vpop.f32.mrf.mxu0
      %v1903 = vadd.f32 0.0, %v1902
      %v1904 = vpop.f32.mrf.mxu0
      %v1905 = vpop.f32.mrf.mxu0
      %v1906 = vadd.f32 0.0, %v1905
      %v1907 = vpop.f32.mrf.mxu0
      %1908 = vmatprep.mubr.bf16.mxu0 0
      %1909 = vmatmul.mubr.bf16.gmra.mxu0 %v1815
      %v1910 = vpop.f32.mrf.mxu0
      %v1911 = vadd.f32 0.0, %v1910
      %v1912 = vpop.f32.mrf.mxu0
      %v1913 = vpop.f32.mrf.mxu0
      %v1914 = vadd.f32 0.0, %v1913
      %v1915 = vpop.f32.mrf.mxu0
      %1916 = vdwg.mxu0
      %v1917 = vadd.f32 %v1663, %v1855
      %v1918 = vadd.f32 %v1664, %v1858
      %v1919 = vadd.f32 %v1665, %v1863
      %v1920 = vadd.f32 %v1666, %v1866
      %v1921 = vadd.f32 %v1667, %v1871
      %v1922 = vadd.f32 %v1668, %v1874
      %v1923 = vadd.f32 %v1669, %v1879
      %v1924 = vadd.f32 %v1670, %v1882
      %v1925 = vadd.f32 %v1671, %v1887
      %v1926 = vadd.f32 %v1672, %v1890
      %v1927 = vadd.f32 %v1673, %v1895
      %v1928 = vadd.f32 %v1674, %v1898
      %v1929 = vadd.f32 %v1675, %v1903
      %v1930 = vadd.f32 %v1676, %v1906
      %v1931 = vadd.f32 %v1677, %v1911
      %v1932 = vadd.f32 %v1678, %v1914
      %s1933 = sadd.s32 %s243, 2
      %s1934 = smul.u32 %s1933, 3
      %s1935 = smul.addr %s1934, 4
      %s1936 = scalar_lea.vmem %s220, %s1935
      %v1937 = vld [vmem:[%s1936] sm:$0xf]
      %v1938 = vld [vmem:[%s1936 + $0x4] sm:$0xf]
      %v1939 = vld [vmem:[%s1936 + $0xc] sm:$0xf]
      %v1940 = vld [vmem:[%s1936 + $0x10] sm:$0xf]
      %v1941 = vld [vmem:[%s1936 + $0x18] sm:$0xf]
      %v1942 = vld [vmem:[%s1936 + $0x1c] sm:$0xf]
      %v1943 = vld [vmem:[%s1936 + $0x24] sm:$0xf]
      %v1944 = vld [vmem:[%s1936 + $0x28] sm:$0xf]
      %v1945 = vld [vmem:[%s1936 + $0x30] sm:$0xf]
      %v1946 = vld [vmem:[%s1936 + $0x34] sm:$0xf]
      %v1947 = vld [vmem:[%s1936 + $0x3c] sm:$0xf]
      %v1948 = vld [vmem:[%s1936 + $0x40] sm:$0xf]
      %v1949 = vld [vmem:[%s1936 + $0x48] sm:$0xf]
      %v1950 = vld [vmem:[%s1936 + $0x4c] sm:$0xf]
      %v1951 = vld [vmem:[%s1936 + $0x54] sm:$0xf]
      %v1952 = vld [vmem:[%s1936 + $0x58] sm:$0xf]
      %s1953 = scalar_lea.vmem %s224, 12
      %v1954 = vld [vmem:[%s1953] sm:$0x3]
      %v1971 = vunpack.c.l.b16 %v1937
      %v1972 = vunpack.c.l.b16 %v1938
      %v1973 = vunpack.c.l.b16 %v1939
      %v1974 = vunpack.c.l.b16 %v1940
      %v1975 = vunpack.c.l.b16 %v1941
      %v1976 = vunpack.c.l.b16 %v1942
      %v1977 = vunpack.c.l.b16 %v1943
      %v1978 = vunpack.c.l.b16 %v1944
      %v1979 = vunpack.c.l.b16 %v1945
      %v1980 = vunpack.c.l.b16 %v1946
      %v1981 = vunpack.c.l.b16 %v1947
      %v1982 = vunpack.c.l.b16 %v1948
      %v1983 = vunpack.c.l.b16 %v1949
      %v1984 = vunpack.c.l.b16 %v1950
      %v1985 = vunpack.c.l.b16 %v1951
      %v1986 = vunpack.c.l.b16 %v1952
      %v1987 = vpack.c.b16 %v1972, %v1971
      %v1988 = vpack.c.b16 %v1974, %v1973
      %v1989 = vpack.c.b16 %v1976, %v1975
      %v1990 = vpack.c.b16 %v1978, %v1977
      %v1991 = vpack.c.b16 %v1980, %v1979
      %v1992 = vpack.c.b16 %v1982, %v1981
      %v1993 = vpack.c.b16 %v1984, %v1983
      %v1994 = vpack.c.b16 %v1986, %v1985
      %v1996 = vsel %vm311, %v1987, 0
      %v1999 = vsel %vm311, %v1988, 0
      %v2002 = vsel %vm311, %v1989, 0
      %v2005 = vsel %vm311, %v1990, 0
      %v2008 = vsel %vm311, %v1991, 0
      %v2011 = vsel %vm311, %v1992, 0
      %v2014 = vsel %vm311, %v1993, 0
      %v2017 = vsel %vm311, %v1994, 0
      %v2020 = vsel %vm336, %v1954, 0
      %2022 = vmatprep.subr.bf16.mxu0 0
      %2023 = vmatpush1.bf16.msra.mxu0 0
      %2024 = vmatprep.subr.bf16.mxu0 0
      %2025 = vmatpush1.bf16.msra.mxu0 0
      %2026 = vmatprep.subr.bf16.mxu0 0
      %2027 = vmatpush1.bf16.msra.mxu0 0
      %2028 = vmatprep.subr.bf16.mxu0 0
      %2029 = vmatpush1.bf16.msra.mxu0 0
      %2030 = vmatprep.subr.bf16.mxu0 0
      %2031 = vmatpush1.bf16.msra.mxu0 0
      %2032 = vmatprep.subr.bf16.mxu0 0
      %2033 = vmatpush1.bf16.msra.mxu0 0
      %2034 = vmatprep.subr.bf16.mxu0 0
      %2035 = vmatpush1.bf16.msra.mxu0 0
      %2036 = vmatprep.subr.bf16.mxu0 0
      %2037 = vmatpush1.bf16.msra.mxu0 %v2020
      %2038 = vmatprep.subr.bf16.mxu0 0
      %2039 = vmatpush2.bf16.msra.mxu0 0
      %2040 = vmatprep.subr.bf16.mxu0 0
      %2041 = vmatpush2.bf16.msra.mxu0 0
      %2042 = vmatprep.subr.bf16.mxu0 0
      %2043 = vmatpush2.bf16.msra.mxu0 0
      %2044 = vmatprep.subr.bf16.mxu0 0
      %2045 = vmatpush2.bf16.msra.mxu0 0
      %2046 = vmatprep.subr.bf16.mxu0 0
      %2047 = vmatpush2.bf16.msra.mxu0 0
      %2048 = vmatprep.subr.bf16.mxu0 0
      %2049 = vmatpush2.bf16.msra.mxu0 0
      %2050 = vmatprep.subr.bf16.mxu0 0
      %2051 = vmatpush2.bf16.msra.mxu0 0
      %2052 = vmatprep.subr.bf16.mxu0 0
      %2053 = vmatpush2.bf16.msra.mxu0 0
      %2054 = vmatprep.mubr.bf16.mxu0 0
      %2055 = vmatmul.mubr.bf16.gmra.mxu0 %v1996
      %v2056 = vpop.f32.mrf.mxu0
      %v2057 = vadd.f32 0.0, %v2056
      %v2058 = vpop.f32.mrf.mxu0
      %v2059 = vpop.f32.mrf.mxu0
      %v2060 = vadd.f32 0.0, %v2059
      %v2061 = vpop.f32.mrf.mxu0
      %2062 = vmatprep.mubr.bf16.mxu0 0
      %2063 = vmatmul.mubr.bf16.gmra.mxu0 %v1999
      %v2064 = vpop.f32.mrf.mxu0
      %v2065 = vadd.f32 0.0, %v2064
      %v2066 = vpop.f32.mrf.mxu0
      %v2067 = vpop.f32.mrf.mxu0
      %v2068 = vadd.f32 0.0, %v2067
      %v2069 = vpop.f32.mrf.mxu0
      %2070 = vmatprep.mubr.bf16.mxu0 0
      %2071 = vmatmul.mubr.bf16.gmra.mxu0 %v2002
      %v2072 = vpop.f32.mrf.mxu0
      %v2073 = vadd.f32 0.0, %v2072
      %v2074 = vpop.f32.mrf.mxu0
      %v2075 = vpop.f32.mrf.mxu0
      %v2076 = vadd.f32 0.0, %v2075
      %v2077 = vpop.f32.mrf.mxu0
      %2078 = vmatprep.mubr.bf16.mxu0 0
      %2079 = vmatmul.mubr.bf16.gmra.mxu0 %v2005
      %v2080 = vpop.f32.mrf.mxu0
      %v2081 = vadd.f32 0.0, %v2080
      %v2082 = vpop.f32.mrf.mxu0
      %v2083 = vpop.f32.mrf.mxu0
      %v2084 = vadd.f32 0.0, %v2083
      %v2085 = vpop.f32.mrf.mxu0
      %2086 = vmatprep.mubr.bf16.mxu0 0
      %2087 = vmatmul.mubr.bf16.gmra.mxu0 %v2008
      %v2088 = vpop.f32.mrf.mxu0
      %v2089 = vadd.f32 0.0, %v2088
      %v2090 = vpop.f32.mrf.mxu0
      %v2091 = vpop.f32.mrf.mxu0
      %v2092 = vadd.f32 0.0, %v2091
      %v2093 = vpop.f32.mrf.mxu0
      %2094 = vmatprep.mubr.bf16.mxu0 0
      %2095 = vmatmul.mubr.bf16.gmra.mxu0 %v2011
      %v2096 = vpop.f32.mrf.mxu0
      %v2097 = vadd.f32 0.0, %v2096
      %v2098 = vpop.f32.mrf.mxu0
      %v2099 = vpop.f32.mrf.mxu0
      %v2100 = vadd.f32 0.0, %v2099
      %v2101 = vpop.f32.mrf.mxu0
      %2102 = vmatprep.mubr.bf16.mxu0 0
      %2103 = vmatmul.mubr.bf16.gmra.mxu0 %v2014
      %v2104 = vpop.f32.mrf.mxu0
      %v2105 = vadd.f32 0.0, %v2104
      %v2106 = vpop.f32.mrf.mxu0
      %v2107 = vpop.f32.mrf.mxu0
      %v2108 = vadd.f32 0.0, %v2107
      %v2109 = vpop.f32.mrf.mxu0
      %2110 = vmatprep.mubr.bf16.mxu0 0
      %2111 = vmatmul.mubr.bf16.gmra.mxu0 %v2017
      %v2112 = vpop.f32.mrf.mxu0
      %v2113 = vadd.f32 0.0, %v2112
      %v2114 = vpop.f32.mrf.mxu0
      %v2115 = vpop.f32.mrf.mxu0
      %v2116 = vadd.f32 0.0, %v2115
      %v2117 = vpop.f32.mrf.mxu0
      %2118 = vdwg.mxu0
      %v2119 = vadd.f32 %v1917, %v2057
      %v2120 = vadd.f32 %v1918, %v2060
      %v2121 = vadd.f32 %v1919, %v2065
      %v2122 = vadd.f32 %v1920, %v2068
      %v2123 = vadd.f32 %v1921, %v2073
      %v2124 = vadd.f32 %v1922, %v2076
      %v2125 = vadd.f32 %v1923, %v2081
      %v2126 = vadd.f32 %v1924, %v2084
      %v2127 = vadd.f32 %v1925, %v2089
      %v2128 = vadd.f32 %v1926, %v2092
      %v2129 = vadd.f32 %v1927, %v2097
      %v2130 = vadd.f32 %v1928, %v2100
      %v2131 = vadd.f32 %v1929, %v2105
      %v2132 = vadd.f32 %v1930, %v2108
      %v2133 = vadd.f32 %v1931, %v2113
      %v2134 = vadd.f32 %v1932, %v2116
      %v2135 = vld [vmem:[%s1936] sm:$0xf]
      %v2136 = vld [vmem:[%s1936 + $0x4] sm:$0xf]
      %v2137 = vld [vmem:[%s1936 + $0x8] sm:$0x1]
      %v2138 = vld [vmem:[%s1936 + $0xc] sm:$0xf]
      %v2139 = vld [vmem:[%s1936 + $0x10] sm:$0xf]
      %v2140 = vld [vmem:[%s1936 + $0x14] sm:$0x1]
      %v2141 = vld [vmem:[%s1936 + $0x18] sm:$0xf]
      %v2142 = vld [vmem:[%s1936 + $0x1c] sm:$0xf]
      %v2143 = vld [vmem:[%s1936 + $0x20] sm:$0x1]
      %v2144 = vld [vmem:[%s1936 + $0x24] sm:$0xf]
      %v2145 = vld [vmem:[%s1936 + $0x28] sm:$0xf]
      %v2146 = vld [vmem:[%s1936 + $0x2c] sm:$0x1]
      %v2147 = vld [vmem:[%s1936 + $0x30] sm:$0xf]
      %v2148 = vld [vmem:[%s1936 + $0x34] sm:$0xf]
      %v2149 = vld [vmem:[%s1936 + $0x38] sm:$0x1]
      %v2150 = vld [vmem:[%s1936 + $0x3c] sm:$0xf]
      %v2151 = vld [vmem:[%s1936 + $0x40] sm:$0xf]
      %v2152 = vld [vmem:[%s1936 + $0x44] sm:$0x1]
      %v2153 = vld [vmem:[%s1936 + $0x48] sm:$0xf]
      %v2154 = vld [vmem:[%s1936 + $0x4c] sm:$0xf]
      %v2155 = vld [vmem:[%s1936 + $0x50] sm:$0x1]
      %v2156 = vld [vmem:[%s1936 + $0x54] sm:$0xf]
      %v2157 = vld [vmem:[%s1936 + $0x58] sm:$0xf]
      %v2158 = vld [vmem:[%s1936 + $0x5c] sm:$0x1]
      %v2160 = vshrl.u32 %v2135, 16
      %v2162 = vrot.slane %v2160, 4
      %v2163 = vshll.u32 %v2135, 16
      %v2165 = vrot.slane %v2163, 5
      %v2166 = vor.u32 %v2162, %v2165
      %v2167 = vrot.slane %v2166, 4
      %v2169 = vshll.u32 %v2136, 16
      %v2171 = vrot.slane %v2169, 5
      %v2172 = vsel %vm479, %v2167, %v2171
      %v2173 = vshrl.u32 %v2136, 16
      %v2175 = vrot.slane %v2173, 4
      %v2176 = vor.u32 %v2175, %v2171
      %v2177 = vrot.slane %v2176, 4
      %v2179 = vshll.u32 %v2137, 16
      %v2181 = vrot.slane %v2179, 5
      %v2182 = vsel %vm479, %v2177, %v2181
      %v2184 = vshrl.u32 %v2138, 16
      %v2186 = vrot.slane %v2184, 4
      %v2187 = vshll.u32 %v2138, 16
      %v2189 = vrot.slane %v2187, 5
      %v2190 = vor.u32 %v2186, %v2189
      %v2191 = vrot.slane %v2190, 4
      %v2193 = vshll.u32 %v2139, 16
      %v2195 = vrot.slane %v2193, 5
      %v2196 = vsel %vm479, %v2191, %v2195
      %v2197 = vshrl.u32 %v2139, 16
      %v2199 = vrot.slane %v2197, 4
      %v2200 = vor.u32 %v2199, %v2195
      %v2201 = vrot.slane %v2200, 4
      %v2203 = vshll.u32 %v2140, 16
      %v2205 = vrot.slane %v2203, 5
      %v2206 = vsel %vm479, %v2201, %v2205
      %v2208 = vshrl.u32 %v2141, 16
      %v2210 = vrot.slane %v2208, 4
      %v2211 = vshll.u32 %v2141, 16
      %v2213 = vrot.slane %v2211, 5
      %v2214 = vor.u32 %v2210, %v2213
      %v2215 = vrot.slane %v2214, 4
      %v2217 = vshll.u32 %v2142, 16
      %v2219 = vrot.slane %v2217, 5
      %v2220 = vsel %vm479, %v2215, %v2219
      %v2221 = vshrl.u32 %v2142, 16
      %v2223 = vrot.slane %v2221, 4
      %v2224 = vor.u32 %v2223, %v2219
      %v2225 = vrot.slane %v2224, 4
      %v2227 = vshll.u32 %v2143, 16
      %v2229 = vrot.slane %v2227, 5
      %v2230 = vsel %vm479, %v2225, %v2229
      %v2232 = vshrl.u32 %v2144, 16
      %v2234 = vrot.slane %v2232, 4
      %v2235 = vshll.u32 %v2144, 16
      %v2237 = vrot.slane %v2235, 5
      %v2238 = vor.u32 %v2234, %v2237
      %v2239 = vrot.slane %v2238, 4
      %v2241 = vshll.u32 %v2145, 16
      %v2243 = vrot.slane %v2241, 5
      %v2244 = vsel %vm479, %v2239, %v2243
      %v2245 = vshrl.u32 %v2145, 16
      %v2247 = vrot.slane %v2245, 4
      %v2248 = vor.u32 %v2247, %v2243
      %v2249 = vrot.slane %v2248, 4
      %v2251 = vshll.u32 %v2146, 16
      %v2253 = vrot.slane %v2251, 5
      %v2254 = vsel %vm479, %v2249, %v2253
      %v2256 = vshrl.u32 %v2147, 16
      %v2258 = vrot.slane %v2256, 4
      %v2259 = vshll.u32 %v2147, 16
      %v2261 = vrot.slane %v2259, 5
      %v2262 = vor.u32 %v2258, %v2261
      %v2263 = vrot.slane %v2262, 4
      %v2265 = vshll.u32 %v2148, 16
      %v2267 = vrot.slane %v2265, 5
      %v2268 = vsel %vm479, %v2263, %v2267
      %v2269 = vshrl.u32 %v2148, 16
      %v2271 = vrot.slane %v2269, 4
      %v2272 = vor.u32 %v2271, %v2267
      %v2273 = vrot.slane %v2272, 4
      %v2275 = vshll.u32 %v2149, 16
      %v2277 = vrot.slane %v2275, 5
      %v2278 = vsel %vm479, %v2273, %v2277
      %v2280 = vshrl.u32 %v2150, 16
      %v2282 = vrot.slane %v2280, 4
      %v2283 = vshll.u32 %v2150, 16
      %v2285 = vrot.slane %v2283, 5
      %v2286 = vor.u32 %v2282, %v2285
      %v2287 = vrot.slane %v2286, 4
      %v2289 = vshll.u32 %v2151, 16
      %v2291 = vrot.slane %v2289, 5
      %v2292 = vsel %vm479, %v2287, %v2291
      %v2293 = vshrl.u32 %v2151, 16
      %v2295 = vrot.slane %v2293, 4
      %v2296 = vor.u32 %v2295, %v2291
      %v2297 = vrot.slane %v2296, 4
      %v2299 = vshll.u32 %v2152, 16
      %v2301 = vrot.slane %v2299, 5
      %v2302 = vsel %vm479, %v2297, %v2301
      %v2304 = vshrl.u32 %v2153, 16
      %v2306 = vrot.slane %v2304, 4
      %v2307 = vshll.u32 %v2153, 16
      %v2309 = vrot.slane %v2307, 5
      %v2310 = vor.u32 %v2306, %v2309
      %v2311 = vrot.slane %v2310, 4
      %v2313 = vshll.u32 %v2154, 16
      %v2315 = vrot.slane %v2313, 5
      %v2316 = vsel %vm479, %v2311, %v2315
      %v2317 = vshrl.u32 %v2154, 16
      %v2319 = vrot.slane %v2317, 4
      %v2320 = vor.u32 %v2319, %v2315
      %v2321 = vrot.slane %v2320, 4
      %v2323 = vshll.u32 %v2155, 16
      %v2325 = vrot.slane %v2323, 5
      %v2326 = vsel %vm479, %v2321, %v2325
      %v2328 = vshrl.u32 %v2156, 16
      %v2330 = vrot.slane %v2328, 4
      %v2331 = vshll.u32 %v2156, 16
      %v2333 = vrot.slane %v2331, 5
      %v2334 = vor.u32 %v2330, %v2333
      %v2335 = vrot.slane %v2334, 4
      %v2337 = vshll.u32 %v2157, 16
      %v2339 = vrot.slane %v2337, 5
      %v2340 = vsel %vm479, %v2335, %v2339
      %v2341 = vshrl.u32 %v2157, 16
      %v2343 = vrot.slane %v2341, 4
      %v2344 = vor.u32 %v2343, %v2339
      %v2345 = vrot.slane %v2344, 4
      %v2347 = vshll.u32 %v2158, 16
      %v2349 = vrot.slane %v2347, 5
      %v2350 = vsel %vm479, %v2345, %v2349
      %s2351 = scalar_lea.vmem %s224, 14
      %v2352 = vld [vmem:[%s2351] sm:$0x3]
      %v2353 = vunpack.c.l.b16 %v2172
      %v2354 = vunpack.c.l.b16 %v2182
      %v2355 = vunpack.c.l.b16 %v2196
      %v2356 = vunpack.c.l.b16 %v2206
      %v2357 = vunpack.c.l.b16 %v2220
      %v2358 = vunpack.c.l.b16 %v2230
      %v2359 = vunpack.c.l.b16 %v2244
      %v2360 = vunpack.c.l.b16 %v2254
      %v2361 = vunpack.c.l.b16 %v2268
      %v2362 = vunpack.c.l.b16 %v2278
      %v2363 = vunpack.c.l.b16 %v2292
      %v2364 = vunpack.c.l.b16 %v2302
      %v2365 = vunpack.c.l.b16 %v2316
      %v2366 = vunpack.c.l.b16 %v2326
      %v2367 = vunpack.c.l.b16 %v2340
      %v2368 = vunpack.c.l.b16 %v2350
      %v2369 = vpack.c.b16 %v2354, %v2353
      %v2370 = vpack.c.b16 %v2356, %v2355
      %v2371 = vpack.c.b16 %v2358, %v2357
      %v2372 = vpack.c.b16 %v2360, %v2359
      %v2373 = vpack.c.b16 %v2362, %v2361
      %v2374 = vpack.c.b16 %v2364, %v2363
      %v2375 = vpack.c.b16 %v2366, %v2365
      %v2376 = vpack.c.b16 %v2368, %v2367
      %v2378 = vsel %vm311, %v2369, 0
      %v2381 = vsel %vm311, %v2370, 0
      %v2384 = vsel %vm311, %v2371, 0
      %v2387 = vsel %vm311, %v2372, 0
      %v2390 = vsel %vm311, %v2373, 0
      %v2393 = vsel %vm311, %v2374, 0
      %v2396 = vsel %vm311, %v2375, 0
      %v2399 = vsel %vm311, %v2376, 0
      %v2402 = vsel %vm336, %v2352, 0
      %2404 = vmatprep.subr.bf16.mxu0 0
      %2405 = vmatpush1.bf16.msra.mxu0 0
      %2406 = vmatprep.subr.bf16.mxu0 0
      %2407 = vmatpush1.bf16.msra.mxu0 0
      %2408 = vmatprep.subr.bf16.mxu0 0
      %2409 = vmatpush1.bf16.msra.mxu0 0
      %2410 = vmatprep.subr.bf16.mxu0 0
      %2411 = vmatpush1.bf16.msra.mxu0 0
      %2412 = vmatprep.subr.bf16.mxu0 0
      %2413 = vmatpush1.bf16.msra.mxu0 0
      %2414 = vmatprep.subr.bf16.mxu0 0
      %2415 = vmatpush1.bf16.msra.mxu0 0
      %2416 = vmatprep.subr.bf16.mxu0 0
      %2417 = vmatpush1.bf16.msra.mxu0 0
      %2418 = vmatprep.subr.bf16.mxu0 0
      %2419 = vmatpush1.bf16.msra.mxu0 %v2402
      %2420 = vmatprep.subr.bf16.mxu0 0
      %2421 = vmatpush2.bf16.msra.mxu0 0
      %2422 = vmatprep.subr.bf16.mxu0 0
      %2423 = vmatpush2.bf16.msra.mxu0 0
      %2424 = vmatprep.subr.bf16.mxu0 0
      %2425 = vmatpush2.bf16.msra.mxu0 0
      %2426 = vmatprep.subr.bf16.mxu0 0
      %2427 = vmatpush2.bf16.msra.mxu0 0
      %2428 = vmatprep.subr.bf16.mxu0 0
      %2429 = vmatpush2.bf16.msra.mxu0 0
      %2430 = vmatprep.subr.bf16.mxu0 0
      %2431 = vmatpush2.bf16.msra.mxu0 0
      %2432 = vmatprep.subr.bf16.mxu0 0
      %2433 = vmatpush2.bf16.msra.mxu0 0
      %2434 = vmatprep.subr.bf16.mxu0 0
      %2435 = vmatpush2.bf16.msra.mxu0 0
      %2436 = vmatprep.mubr.bf16.mxu0 0
      %2437 = vmatmul.mubr.bf16.gmra.mxu0 %v2378
      %v2438 = vpop.f32.mrf.mxu0
      %v2439 = vadd.f32 0.0, %v2438
      %v2440 = vpop.f32.mrf.mxu0
      %v2441 = vpop.f32.mrf.mxu0
      %v2442 = vadd.f32 0.0, %v2441
      %v2443 = vpop.f32.mrf.mxu0
      %2444 = vmatprep.mubr.bf16.mxu0 0
      %2445 = vmatmul.mubr.bf16.gmra.mxu0 %v2381
      %v2446 = vpop.f32.mrf.mxu0
      %v2447 = vadd.f32 0.0, %v2446
      %v2448 = vpop.f32.mrf.mxu0
      %v2449 = vpop.f32.mrf.mxu0
      %v2450 = vadd.f32 0.0, %v2449
      %v2451 = vpop.f32.mrf.mxu0
      %2452 = vmatprep.mubr.bf16.mxu0 0
      %2453 = vmatmul.mubr.bf16.gmra.mxu0 %v2384
      %v2454 = vpop.f32.mrf.mxu0
      %v2455 = vadd.f32 0.0, %v2454
      %v2456 = vpop.f32.mrf.mxu0
      %v2457 = vpop.f32.mrf.mxu0
      %v2458 = vadd.f32 0.0, %v2457
      %v2459 = vpop.f32.mrf.mxu0
      %2460 = vmatprep.mubr.bf16.mxu0 0
      %2461 = vmatmul.mubr.bf16.gmra.mxu0 %v2387
      %v2462 = vpop.f32.mrf.mxu0
      %v2463 = vadd.f32 0.0, %v2462
      %v2464 = vpop.f32.mrf.mxu0
      %v2465 = vpop.f32.mrf.mxu0
      %v2466 = vadd.f32 0.0, %v2465
      %v2467 = vpop.f32.mrf.mxu0
      %2468 = vmatprep.mubr.bf16.mxu0 0
      %2469 = vmatmul.mubr.bf16.gmra.mxu0 %v2390
      %v2470 = vpop.f32.mrf.mxu0
      %v2471 = vadd.f32 0.0, %v2470
      %v2472 = vpop.f32.mrf.mxu0
      %v2473 = vpop.f32.mrf.mxu0
      %v2474 = vadd.f32 0.0, %v2473
      %v2475 = vpop.f32.mrf.mxu0
      %2476 = vmatprep.mubr.bf16.mxu0 0
      %2477 = vmatmul.mubr.bf16.gmra.mxu0 %v2393
      %v2478 = vpop.f32.mrf.mxu0
      %v2479 = vadd.f32 0.0, %v2478
      %v2480 = vpop.f32.mrf.mxu0
      %v2481 = vpop.f32.mrf.mxu0
      %v2482 = vadd.f32 0.0, %v2481
      %v2483 = vpop.f32.mrf.mxu0
      %2484 = vmatprep.mubr.bf16.mxu0 0
      %2485 = vmatmul.mubr.bf16.gmra.mxu0 %v2396
      %v2486 = vpop.f32.mrf.mxu0
      %v2487 = vadd.f32 0.0, %v2486
      %v2488 = vpop.f32.mrf.mxu0
      %v2489 = vpop.f32.mrf.mxu0
      %v2490 = vadd.f32 0.0, %v2489
      %v2491 = vpop.f32.mrf.mxu0
      %2492 = vmatprep.mubr.bf16.mxu0 0
      %2493 = vmatmul.mubr.bf16.gmra.mxu0 %v2399
      %v2494 = vpop.f32.mrf.mxu0
      %v2495 = vadd.f32 0.0, %v2494
      %v2496 = vpop.f32.mrf.mxu0
      %v2497 = vpop.f32.mrf.mxu0
      %v2498 = vadd.f32 0.0, %v2497
      %v2499 = vpop.f32.mrf.mxu0
      %2500 = vdwg.mxu0
      %v2501 = vadd.f32 %v2119, %v2439
      %v2502 = vadd.f32 %v2120, %v2442
      %v2503 = vadd.f32 %v2121, %v2447
      %v2504 = vadd.f32 %v2122, %v2450
      %v2505 = vadd.f32 %v2123, %v2455
      %v2506 = vadd.f32 %v2124, %v2458
      %v2507 = vadd.f32 %v2125, %v2463
      %v2508 = vadd.f32 %v2126, %v2466
      %v2509 = vadd.f32 %v2127, %v2471
      %v2510 = vadd.f32 %v2128, %v2474
      %v2511 = vadd.f32 %v2129, %v2479
      %v2512 = vadd.f32 %v2130, %v2482
      %v2513 = vadd.f32 %v2131, %v2487
      %v2514 = vadd.f32 %v2132, %v2490
      %v2515 = vadd.f32 %v2133, %v2495
      %v2516 = vadd.f32 %v2134, %v2498
      %v2517 = vld [vmem:[%s1936] sm:$0xe]
      %v2518 = vld [vmem:[%s1936 + $0xc] sm:$0xe]
      %v2519 = vld [vmem:[%s1936 + $0x18] sm:$0xe]
      %v2520 = vld [vmem:[%s1936 + $0x24] sm:$0xe]
      %v2521 = vld [vmem:[%s1936 + $0x30] sm:$0xe]
      %v2522 = vld [vmem:[%s1936 + $0x3c] sm:$0xe]
      %v2523 = vld [vmem:[%s1936 + $0x48] sm:$0xe]
      %v2524 = vld [vmem:[%s1936 + $0x54] sm:$0xe]
      %v2549 = vrot.slane %v2517, 5
      %v2550 = vrot.slane %v2549, 4
      %v2551 = vrot.slane %v2136, 5
      %v2552 = vsel %vm872, %v2550, %v2551
      %v2553 = vrot.slane %v2551, 4
      %v2554 = vrot.slane %v2137, 5
      %v2555 = vsel %vm872, %v2553, %v2554
      %v2556 = vrot.slane %v2518, 5
      %v2557 = vrot.slane %v2556, 4
      %v2558 = vrot.slane %v2139, 5
      %v2559 = vsel %vm872, %v2557, %v2558
      %v2560 = vrot.slane %v2558, 4
      %v2561 = vrot.slane %v2140, 5
      %v2562 = vsel %vm872, %v2560, %v2561
      %v2563 = vrot.slane %v2519, 5
      %v2564 = vrot.slane %v2563, 4
      %v2565 = vrot.slane %v2142, 5
      %v2566 = vsel %vm872, %v2564, %v2565
      %v2567 = vrot.slane %v2565, 4
      %v2568 = vrot.slane %v2143, 5
      %v2569 = vsel %vm872, %v2567, %v2568
      %v2570 = vrot.slane %v2520, 5
      %v2571 = vrot.slane %v2570, 4
      %v2572 = vrot.slane %v2145, 5
      %v2573 = vsel %vm872, %v2571, %v2572
      %v2574 = vrot.slane %v2572, 4
      %v2575 = vrot.slane %v2146, 5
      %v2576 = vsel %vm872, %v2574, %v2575
      %v2577 = vrot.slane %v2521, 5
      %v2578 = vrot.slane %v2577, 4
      %v2579 = vrot.slane %v2148, 5
      %v2580 = vsel %vm872, %v2578, %v2579
      %v2581 = vrot.slane %v2579, 4
      %v2582 = vrot.slane %v2149, 5
      %v2583 = vsel %vm872, %v2581, %v2582
      %v2584 = vrot.slane %v2522, 5
      %v2585 = vrot.slane %v2584, 4
      %v2586 = vrot.slane %v2151, 5
      %v2587 = vsel %vm872, %v2585, %v2586
      %v2588 = vrot.slane %v2586, 4
      %v2589 = vrot.slane %v2152, 5
      %v2590 = vsel %vm872, %v2588, %v2589
      %v2591 = vrot.slane %v2523, 5
      %v2592 = vrot.slane %v2591, 4
      %v2593 = vrot.slane %v2154, 5
      %v2594 = vsel %vm872, %v2592, %v2593
      %v2595 = vrot.slane %v2593, 4
      %v2596 = vrot.slane %v2155, 5
      %v2597 = vsel %vm872, %v2595, %v2596
      %v2598 = vrot.slane %v2524, 5
      %v2599 = vrot.slane %v2598, 4
      %v2600 = vrot.slane %v2157, 5
      %v2601 = vsel %vm872, %v2599, %v2600
      %v2602 = vrot.slane %v2600, 4
      %v2603 = vrot.slane %v2158, 5
      %v2604 = vsel %vm872, %v2602, %v2603
      %s2605 = scalar_lea.vmem %s224, 16
      %v2606 = vld [vmem:[%s2605] sm:$0x3]
      %v2607 = vunpack.c.l.b16 %v2552
      %v2608 = vunpack.c.l.b16 %v2555
      %v2609 = vunpack.c.l.b16 %v2559
      %v2610 = vunpack.c.l.b16 %v2562
      %v2611 = vunpack.c.l.b16 %v2566
      %v2612 = vunpack.c.l.b16 %v2569
      %v2613 = vunpack.c.l.b16 %v2573
      %v2614 = vunpack.c.l.b16 %v2576
      %v2615 = vunpack.c.l.b16 %v2580
      %v2616 = vunpack.c.l.b16 %v2583
      %v2617 = vunpack.c.l.b16 %v2587
      %v2618 = vunpack.c.l.b16 %v2590
      %v2619 = vunpack.c.l.b16 %v2594
      %v2620 = vunpack.c.l.b16 %v2597
      %v2621 = vunpack.c.l.b16 %v2601
      %v2622 = vunpack.c.l.b16 %v2604
      %v2623 = vpack.c.b16 %v2608, %v2607
      %v2624 = vpack.c.b16 %v2610, %v2609
      %v2625 = vpack.c.b16 %v2612, %v2611
      %v2626 = vpack.c.b16 %v2614, %v2613
      %v2627 = vpack.c.b16 %v2616, %v2615
      %v2628 = vpack.c.b16 %v2618, %v2617
      %v2629 = vpack.c.b16 %v2620, %v2619
      %v2630 = vpack.c.b16 %v2622, %v2621
      %v2632 = vsel %vm311, %v2623, 0
      %v2635 = vsel %vm311, %v2624, 0
      %v2638 = vsel %vm311, %v2625, 0
      %v2641 = vsel %vm311, %v2626, 0
      %v2644 = vsel %vm311, %v2627, 0
      %v2647 = vsel %vm311, %v2628, 0
      %v2650 = vsel %vm311, %v2629, 0
      %v2653 = vsel %vm311, %v2630, 0
      %v2656 = vsel %vm336, %v2606, 0
      %2658 = vmatprep.subr.bf16.mxu0 0
      %2659 = vmatpush1.bf16.msra.mxu0 0
      %2660 = vmatprep.subr.bf16.mxu0 0
      %2661 = vmatpush1.bf16.msra.mxu0 0
      %2662 = vmatprep.subr.bf16.mxu0 0
      %2663 = vmatpush1.bf16.msra.mxu0 0
      %2664 = vmatprep.subr.bf16.mxu0 0
      %2665 = vmatpush1.bf16.msra.mxu0 0
      %2666 = vmatprep.subr.bf16.mxu0 0
      %2667 = vmatpush1.bf16.msra.mxu0 0
      %2668 = vmatprep.subr.bf16.mxu0 0
      %2669 = vmatpush1.bf16.msra.mxu0 0
      %2670 = vmatprep.subr.bf16.mxu0 0
      %2671 = vmatpush1.bf16.msra.mxu0 0
      %2672 = vmatprep.subr.bf16.mxu0 0
      %2673 = vmatpush1.bf16.msra.mxu0 %v2656
      %2674 = vmatprep.subr.bf16.mxu0 0
      %2675 = vmatpush2.bf16.msra.mxu0 0
      %2676 = vmatprep.subr.bf16.mxu0 0
      %2677 = vmatpush2.bf16.msra.mxu0 0
      %2678 = vmatprep.subr.bf16.mxu0 0
      %2679 = vmatpush2.bf16.msra.mxu0 0
      %2680 = vmatprep.subr.bf16.mxu0 0
      %2681 = vmatpush2.bf16.msra.mxu0 0
      %2682 = vmatprep.subr.bf16.mxu0 0
      %2683 = vmatpush2.bf16.msra.mxu0 0
      %2684 = vmatprep.subr.bf16.mxu0 0
      %2685 = vmatpush2.bf16.msra.mxu0 0
      %2686 = vmatprep.subr.bf16.mxu0 0
      %2687 = vmatpush2.bf16.msra.mxu0 0
      %2688 = vmatprep.subr.bf16.mxu0 0
      %2689 = vmatpush2.bf16.msra.mxu0 0
      %2690 = vmatprep.mubr.bf16.mxu0 0
      %2691 = vmatmul.mubr.bf16.gmra.mxu0 %v2632
      %v2692 = vpop.f32.mrf.mxu0
      %v2693 = vadd.f32 0.0, %v2692
      %v2694 = vpop.f32.mrf.mxu0
      %v2695 = vpop.f32.mrf.mxu0
      %v2696 = vadd.f32 0.0, %v2695
      %v2697 = vpop.f32.mrf.mxu0
      %2698 = vmatprep.mubr.bf16.mxu0 0
      %2699 = vmatmul.mubr.bf16.gmra.mxu0 %v2635
      %v2700 = vpop.f32.mrf.mxu0
      %v2701 = vadd.f32 0.0, %v2700
      %v2702 = vpop.f32.mrf.mxu0
      %v2703 = vpop.f32.mrf.mxu0
      %v2704 = vadd.f32 0.0, %v2703
      %v2705 = vpop.f32.mrf.mxu0
      %2706 = vmatprep.mubr.bf16.mxu0 0
      %2707 = vmatmul.mubr.bf16.gmra.mxu0 %v2638
      %v2708 = vpop.f32.mrf.mxu0
      %v2709 = vadd.f32 0.0, %v2708
      %v2710 = vpop.f32.mrf.mxu0
      %v2711 = vpop.f32.mrf.mxu0
      %v2712 = vadd.f32 0.0, %v2711
      %v2713 = vpop.f32.mrf.mxu0
      %2714 = vmatprep.mubr.bf16.mxu0 0
      %2715 = vmatmul.mubr.bf16.gmra.mxu0 %v2641
      %v2716 = vpop.f32.mrf.mxu0
      %v2717 = vadd.f32 0.0, %v2716
      %v2718 = vpop.f32.mrf.mxu0
      %v2719 = vpop.f32.mrf.mxu0
      %v2720 = vadd.f32 0.0, %v2719
      %v2721 = vpop.f32.mrf.mxu0
      %2722 = vmatprep.mubr.bf16.mxu0 0
      %2723 = vmatmul.mubr.bf16.gmra.mxu0 %v2644
      %v2724 = vpop.f32.mrf.mxu0
      %v2725 = vadd.f32 0.0, %v2724
      %v2726 = vpop.f32.mrf.mxu0
      %v2727 = vpop.f32.mrf.mxu0
      %v2728 = vadd.f32 0.0, %v2727
      %v2729 = vpop.f32.mrf.mxu0
      %2730 = vmatprep.mubr.bf16.mxu0 0
      %2731 = vmatmul.mubr.bf16.gmra.mxu0 %v2647
      %v2732 = vpop.f32.mrf.mxu0
      %v2733 = vadd.f32 0.0, %v2732
      %v2734 = vpop.f32.mrf.mxu0
      %v2735 = vpop.f32.mrf.mxu0
      %v2736 = vadd.f32 0.0, %v2735
      %v2737 = vpop.f32.mrf.mxu0
      %2738 = vmatprep.mubr.bf16.mxu0 0
      %2739 = vmatmul.mubr.bf16.gmra.mxu0 %v2650
      %v2740 = vpop.f32.mrf.mxu0
      %v2741 = vadd.f32 0.0, %v2740
      %v2742 = vpop.f32.mrf.mxu0
      %v2743 = vpop.f32.mrf.mxu0
      %v2744 = vadd.f32 0.0, %v2743
      %v2745 = vpop.f32.mrf.mxu0
      %2746 = vmatprep.mubr.bf16.mxu0 0
      %2747 = vmatmul.mubr.bf16.gmra.mxu0 %v2653
      %v2748 = vpop.f32.mrf.mxu0
      %v2749 = vadd.f32 0.0, %v2748
      %v2750 = vpop.f32.mrf.mxu0
      %v2751 = vpop.f32.mrf.mxu0
      %v2752 = vadd.f32 0.0, %v2751
      %v2753 = vpop.f32.mrf.mxu0
      %2754 = vdwg.mxu0
      %v2755 = vadd.f32 %v2501, %v2693
      %v2756 = vadd.f32 %v2502, %v2696
      %v2757 = vadd.f32 %v2503, %v2701
      %v2758 = vadd.f32 %v2504, %v2704
      %v2759 = vadd.f32 %v2505, %v2709
      %v2760 = vadd.f32 %v2506, %v2712
      %v2761 = vadd.f32 %v2507, %v2717
      %v2762 = vadd.f32 %v2508, %v2720
      %v2763 = vadd.f32 %v2509, %v2725
      %v2764 = vadd.f32 %v2510, %v2728
      %v2765 = vadd.f32 %v2511, %v2733
      %v2766 = vadd.f32 %v2512, %v2736
      %v2767 = vadd.f32 %v2513, %v2741
      %v2768 = vadd.f32 %v2514, %v2744
      %v2769 = vadd.f32 %v2515, %v2749
      %v2770 = vadd.f32 %v2516, %v2752
      %v2771 = vpack.c.bf16 %v2756, %v2755
      %v2772 = vpack.c.bf16 %v2758, %v2757
      %v2773 = vpack.c.bf16 %v2760, %v2759
      %v2774 = vpack.c.bf16 %v2762, %v2761
      %v2775 = vpack.c.bf16 %v2764, %v2763
      %v2776 = vpack.c.bf16 %v2766, %v2765
      %v2777 = vpack.c.bf16 %v2768, %v2767
      %v2778 = vpack.c.bf16 %v2770, %v2769
      %v2787 = vunpack.c.l.b16 %v2771
      %v2788 = vunpack.c.h.b16 %v2771
      %v2789 = vunpack.c.l.b16 %v2772
      %v2790 = vunpack.c.h.b16 %v2772
      %v2791 = vunpack.c.l.b16 %v2773
      %v2792 = vunpack.c.h.b16 %v2773
      %v2793 = vunpack.c.l.b16 %v2774
      %v2794 = vunpack.c.h.b16 %v2774
      %v2795 = vunpack.c.l.b16 %v2775
      %v2796 = vunpack.c.h.b16 %v2775
      %v2797 = vunpack.c.l.b16 %v2776
      %v2798 = vunpack.c.h.b16 %v2776
      %v2799 = vunpack.c.l.b16 %v2777
      %v2800 = vunpack.c.h.b16 %v2777
      %v2801 = vunpack.c.l.b16 %v2778
      %v2802 = vunpack.c.h.b16 %v2778
      %v2803 = vpack.c.b16 %v2787, %v2787
      %v2804 = vpack.c.b16 %v2788, %v2788
      %v2805 = vpack.c.b16 %v2789, %v2789
      %v2806 = vpack.c.b16 %v2790, %v2790
      %v2807 = vpack.c.b16 %v2791, %v2791
      %v2808 = vpack.c.b16 %v2792, %v2792
      %v2809 = vpack.c.b16 %v2793, %v2793
      %v2810 = vpack.c.b16 %v2794, %v2794
      %v2811 = vpack.c.b16 %v2795, %v2795
      %v2812 = vpack.c.b16 %v2796, %v2796
      %v2813 = vpack.c.b16 %v2797, %v2797
      %v2814 = vpack.c.b16 %v2798, %v2798
      %v2815 = vpack.c.b16 %v2799, %v2799
      %v2816 = vpack.c.b16 %v2800, %v2800
      %v2817 = vpack.c.b16 %v2801, %v2801
      %v2818 = vpack.c.b16 %v2802, %v2802
      %vm2835 = vcmask 125952
      %2836 = vst.msk [vmem:[%s240] sm:$0xf] %vm2835, %v2803
      %2837 = vst.msk [vmem:[%s240 + $0x4] sm:$0xf] %vm2835, %v2804
      %2838 = vst.msk [vmem:[%s240 + $0x8] sm:$0xf] %vm2835, %v2805
      %2839 = vst.msk [vmem:[%s240 + $0xc] sm:$0xf] %vm2835, %v2806
      %2840 = vst.msk [vmem:[%s240 + $0x10] sm:$0xf] %vm2835, %v2807
      %2841 = vst.msk [vmem:[%s240 + $0x14] sm:$0xf] %vm2835, %v2808
      %2842 = vst.msk [vmem:[%s240 + $0x18] sm:$0xf] %vm2835, %v2809
      %2843 = vst.msk [vmem:[%s240 + $0x1c] sm:$0xf] %vm2835, %v2810
      %2844 = vst.msk [vmem:[%s240 + $0x20] sm:$0xf] %vm2835, %v2811
      %2845 = vst.msk [vmem:[%s240 + $0x24] sm:$0xf] %vm2835, %v2812
      %2846 = vst.msk [vmem:[%s240 + $0x28] sm:$0xf] %vm2835, %v2813
      %2847 = vst.msk [vmem:[%s240 + $0x2c] sm:$0xf] %vm2835, %v2814
      %2848 = vst.msk [vmem:[%s240 + $0x30] sm:$0xf] %vm2835, %v2815
      %2849 = vst.msk [vmem:[%s240 + $0x34] sm:$0xf] %vm2835, %v2816
      %2850 = vst.msk [vmem:[%s240 + $0x38] sm:$0xf] %vm2835, %v2817
      %2851 = vst.msk [vmem:[%s240 + $0x3c] sm:$0xf] %vm2835, %v2818
      %s2852 = smul.u32 8, %s21
      %p2853 = scmp.lt.s32.totalorder %s19, 1
      %s2854 = scalar_select %p2853, %s19, 1
      %p2855 = scmp.lt.s32.totalorder %s2852, 15
      %s2856 = scalar_select %p2855, %s2852, 15
      %p2857 = scmp.lt.s32.totalorder %s20, 0
      %s2858 = scalar_select %p2857, %s20, 0
      %s2859 = smul.addr %s2856, 2
      %s2860 = sadd.s32 %s2858, %s2859
      %s2861 = smul.addr %s2854, 32
      %s2862 = sadd.s32 %s2860, %s2861
      %s2863 = smul.addr %s2862, 4
      %s2864 = scalar_lea.vmem %s3, %s2863
      // Predicated region
      $region33: #{upsample_forward.1} parent=31 // pred_check
        %p2865 = pneg %p133
      $region34: #{upsample_forward.1} parent=31 // pred_check_branch
        %2867 = sbr.rel (%p2865) target = $region36
      $region35: #{upsample_forward.1} parent=31 // pred_region
        %s2868 = smul.u32 8, %s21
      $region36: #{upsample_forward.1} parent=31 // pred_fallthru
        _
    $region32: #{upsample_forward.1} parent=5 // pred_fallthru
      _
    %p2869 = scmp.le.s32.totalorder 2, %s9
    // Predicated region
    $region37: #{upsample_forward.1} parent=5 // pred_check
      %p2870 = pneg %p2869
    $region38: #{upsample_forward.1} parent=5 // pred_check_branch
      %2872 = sbr.rel (%p2870) target = $region40
    $region39: #{upsample_forward.1} parent=5 // pred_region
      %s2873 = ssub.s32 %s9, 2
      // Predicated region
      $region41: #{upsample_forward.1} parent=39 // pred_check
        %p2874 = pneg %p139
      $region42: #{upsample_forward.1} parent=39 // pred_check_branch
        %2876 = sbr.rel (%p2874) target = $region44
      $region43: #{upsample_forward.1} parent=39 // pred_region
        %s2877 = smul.u32 8, %s24
        %p2878 = scmp.lt.s32.totalorder %s22, 1
        %s2879 = scalar_select %p2878, %s22, 1
        %p2880 = scmp.lt.s32.totalorder %s2877, 15
        %s2881 = scalar_select %p2880, %s2877, 15
        %p2882 = scmp.lt.s32.totalorder %s23, 0
        %s2883 = scalar_select %p2882, %s23, 0
        %s2884 = smul.addr %s2881, 2
        %s2885 = sadd.s32 %s2883, %s2884
        %s2886 = smul.addr %s2879, 32
        %s2887 = sadd.s32 %s2885, %s2886
        %s2888 = smul.addr %s2887, 4
        %s2889 = scalar_lea.vmem %s3, %s2888
      $region44: #{upsample_forward.1} parent=39 // pred_fallthru
        _
    $region40: #{upsample_forward.1} parent=5 // pred_fallthru
      _
  $region6: #{upsample_forward.1} parent=0 // loop_footer
    %s13 = sadd.s32 1, %s9
  $region7: #{upsample_forward.1} parent=0 // loop_footer_branch
    %8 = sbr.rel target = $region3
  $region8: #{upsample_forward.1} parent=0 // loop_exit
    _

</llo_original>
